<compile_context>
chip_gen: v7x
topology: tpu7x:2x2x1
jax: 0.10.0
libtpu: 0.0.40
codegen_flags: <defaults>
</compile_context>

<pallas_src>
import jax
import jax.numpy as jnp
from jax.experimental import pallas as pl
from jax.experimental.pallas import tpu as pltpu


def imha_kernel(q_ref, k_ref, v_ref, wq_ref, wk_ref, wv_ref, wh_ref,
                out_ref, attn_ref):
    # blocks: q/k/v (1,S,D); wq/wk (D,D); wv (D,d_k); wh (d_k,D)
    #         out (1,S,D); attn (1,n_head,S,S)
    q = q_ref[0]                                     # (S, D)
    k = k_ref[0]                                     # (S, D)
    v = v_ref[0]                                     # (S, D)
    S, D = q.shape
    n_head = attn_ref.shape[1]
    d_k = D // n_head

    # Fused per-head Q/K projections: one (S,D)@(D,D) MXU pass each instead of
    # n_head tiny (S,D)@(D,d_k) matmuls.
    qs = jnp.dot(q, wq_ref[...], preferred_element_type=jnp.float32)   # (S, D)
    ks = jnp.dot(k, wk_ref[...], preferred_element_type=jnp.float32)   # (S, D)
    # Shared V projection (v_layers all alias the same nn.Linear): compute once.
    vs = jnp.dot(v, wv_ref[...], preferred_element_type=jnp.float32)   # (S, d_k)

    scale = 1.0 / (float(d_k) ** 0.5)                # compile-time constant

    attn_sum = jnp.zeros((S, S), jnp.float32)
    for h in range(n_head):                          # n_head is small & static
        qh = qs[:, h * d_k:(h + 1) * d_k]            # (S, d_k)
        kh = ks[:, h * d_k:(h + 1) * d_k]            # (S, d_k)
        scores = jnp.dot(qh, kh.T,
                         preferred_element_type=jnp.float32) * scale   # (S, S)
        # TODO(synk): optional attention mask (masked_fill) not wired in;
        #             this kernel implements the mask=None path only.
        m = jnp.max(scores, axis=-1, keepdims=True)
        e = jnp.exp(scores - m)
        a = e / jnp.sum(e, axis=-1, keepdims=True)   # softmax over keys
        attn_ref[0, h] = a                           # per-head attention map
        attn_sum = attn_sum + a

    # mean over heads commutes with the shared-V bmm and the output projection:
    #   mean_h(attn_h @ vs) @ Wh == (mean_h attn_h) @ vs @ Wh
    mean_attn = attn_sum * (1.0 / n_head)
    head_mean = jnp.dot(mean_attn, vs,
                        preferred_element_type=jnp.float32)            # (S, d_k)
    out_ref[0] = jnp.dot(head_mean, wh_ref[...],
                         preferred_element_type=jnp.float32)           # (S, D)


def make_params(key, d_model, n_head):
    """Synthetic weights with shapes matching the PyTorch module.

    wq / wk: per-head projections fused column-wise into (d_model, d_model)
             (column block h*d_k:(h+1)*d_k == head h's projection).
    wv:      shared V projection (d_model, d_k).
    wh:      output projection (d_k, d_model).
    """
    d_k = d_model // n_head
    ks = jax.random.split(key, 4)

    def w(k_, shape):
        fan_in = shape[0]
        return ((1.0 / fan_in) ** 0.5
                * jax.random.normal(k_, shape)).astype(jnp.float32)

    return {
        "wq": w(ks[0], (d_model, d_model)),
        "wk": w(ks[1], (d_model, d_model)),
        "wv": w(ks[2], (d_model, d_k)),
        "wh": w(ks[3], (d_k, d_model)),
    }


def interpretable_mha(q, k, v, params, n_head):
    """q, k, v: (B, S, d_model) f32 -> (outputs (B,S,d_model), attn (B,S,n_head,S))."""
    B, S, D = q.shape
    d_k = D // n_head
    wq, wk, wv, wh = params["wq"], params["wk"], params["wv"], params["wh"]

    flops = 2 * B * (2 * S * D * D            # fused Q/K projections
                     + S * D * d_k            # shared V projection
                     + n_head * S * S * d_k   # per-head score matmuls
                     + S * S * d_k            # mean-attn @ vs
                     + S * d_k * D)           # w_h
    bytes_accessed = 4 * (3 * B * S * D                     # q, k, v
                          + 2 * D * D + D * d_k + d_k * D   # weights
                          + B * S * D + B * n_head * S * S)  # outputs

    act_spec = pl.BlockSpec((1, S, D), lambda b: (b, 0, 0))
    out, attn = pl.pallas_call(
        imha_kernel,
        out_shape=(
            jax.ShapeDtypeStruct((B, S, D), jnp.float32),
            jax.ShapeDtypeStruct((B, n_head, S, S), jnp.float32),
        ),
        grid=(B,),
        in_specs=[
            act_spec, act_spec, act_spec,
            pl.BlockSpec((D, D), lambda b: (0, 0)),      # wq (resident)
            pl.BlockSpec((D, D), lambda b: (0, 0)),      # wk (resident)
            pl.BlockSpec((D, d_k), lambda b: (0, 0)),    # wv (resident)
            pl.BlockSpec((d_k, D), lambda b: (0, 0)),    # wh (resident)
        ],
        out_specs=(
            pl.BlockSpec((1, S, D), lambda b: (b, 0, 0)),
            pl.BlockSpec((1, n_head, S, S), lambda b: (b, 0, 0, 0)),
        ),
        compiler_params=pltpu.CompilerParams(
            dimension_semantics=("parallel",)),
        cost_estimate=pl.CostEstimate(
            flops=flops,
            transcendentals=B * n_head * S * S,
            bytes_accessed=bytes_accessed),
    )(q, k, v, wq, wk, wv, wh)

    # PyTorch stacks heads at dim=2: attn -> (B, Sq, n_head, Sk). Glue transpose.
    return out, jnp.transpose(attn, (0, 2, 1, 3))


def _reference(q, k, v, params, n_head):
    """Pure-JAX mirror of the PyTorch forward (per-head loop, stack, mean)."""
    wq, wk, wv, wh = params["wq"], params["wk"], params["wv"], params["wh"]
    D = q.shape[-1]
    d_k = D // n_head
    heads, attns = [], []
    for h in range(n_head):
        qs = q @ wq[:, h * d_k:(h + 1) * d_k]
        ks = k @ wk[:, h * d_k:(h + 1) * d_k]
        vs = v @ wv                                      # shared v_layer
        scores = jnp.einsum('bqd,bkd->bqk', qs, ks) / jnp.sqrt(jnp.float32(d_k))
        a = jax.nn.softmax(scores, axis=-1)
        heads.append(jnp.einsum('bqk,bkd->bqd', a, vs))  # head (dropout = id)
        attns.append(a)
    head = jnp.stack(heads, axis=2)                      # (B, S, n_head, d_k)
    attn = jnp.stack(attns, axis=2)                      # (B, S, n_head, S)
    outputs = jnp.mean(head, axis=2) if n_head > 1 else heads[0]
    outputs = outputs @ wh                               # (B, S, D), dropout = id
    return outputs, attn


if __name__ == "__main__":
    B, S, D, N_HEAD = 2, 8, 32, 4                        # batch, seq, d_model, heads
    key = jax.random.PRNGKey(0)
    kq, kk, kv, kp = jax.random.split(key, 4)
    q = jax.random.normal(kq, (B, S, D), jnp.float32)
    k = jax.random.normal(kk, (B, S, D), jnp.float32)
    v = jax.random.normal(kv, (B, S, D), jnp.float32)
    params = make_params(kp, D, N_HEAD)

    out, attn = interpretable_mha(q, k, v, params, N_HEAD)
    jax.block_until_ready((out, attn))

    ref_out, ref_attn = _reference(q, k, v, params, N_HEAD)
    assert out.shape == (B, S, D) and attn.shape == (B, S, N_HEAD, S)
    assert jnp.allclose(out, ref_out, atol=1e-4, rtol=1e-4)
    assert jnp.allclose(attn, ref_attn, atol=1e-5, rtol=1e-5)
    print("KERNEL_OK")
</pallas_src>

<mosaic_0001>
module attributes {stable_mosaic.version = 11 : i64} {
  func.func @imha_kernel(%arg0: i32, %arg1: memref<1x8x32xf32, #tpu.memory_space<vmem>>, %arg2: memref<1x8x32xf32, #tpu.memory_space<vmem>>, %arg3: memref<1x8x32xf32, #tpu.memory_space<vmem>>, %arg4: memref<32x32xf32, #tpu.memory_space<vmem>>, %arg5: memref<32x32xf32, #tpu.memory_space<vmem>>, %arg6: memref<32x8xf32, #tpu.memory_space<vmem>>, %arg7: memref<8x32xf32, #tpu.memory_space<vmem>>, %arg8: memref<1x8x32xf32, #tpu.memory_space<vmem>>, %arg9: memref<1x4x8x8xf32, #tpu.memory_space<vmem>>) attributes {dimension_semantics = [#tpu.dimension_semantics<parallel>], iteration_bounds = array<i64: 2>, scalar_prefetch = 0 : i64, scratch_operands = 0 : i64, tpu.core_type = #tpu.core_type<tc>, window_params = [{transform_indices = @transform_0, window_bounds = array<i64: 1, 8, 32>}, {transform_indices = @transform_1, window_bounds = array<i64: 1, 8, 32>}, {transform_indices = @transform_2, window_bounds = array<i64: 1, 8, 32>}, {pipeline_mode = #tpu.pipeline_mode<synchronous>, transform_indices = @transform_3, window_bounds = array<i64: 32, 32>}, {pipeline_mode = #tpu.pipeline_mode<synchronous>, transform_indices = @transform_4, window_bounds = array<i64: 32, 32>}, {pipeline_mode = #tpu.pipeline_mode<synchronous>, transform_indices = @transform_5, window_bounds = array<i64: 32, 8>}, {pipeline_mode = #tpu.pipeline_mode<synchronous>, transform_indices = @transform_6, window_bounds = array<i64: 8, 32>}, {transform_indices = @transform_7, window_bounds = array<i64: 1, 8, 32>}, {transform_indices = @transform_8, window_bounds = array<i64: 1, 4, 8, 8>}]} {
    %c0 = arith.constant 0 : index
    %c0_0 = arith.constant 0 : index
    %c0_1 = arith.constant 0 : index
    %0 = vector.load %arg1[%c0, %c0_0, %c0_1] : memref<1x8x32xf32, #tpu.memory_space<vmem>>, vector<1x8x32xf32>
    %1 = vector.shape_cast %0 : vector<1x8x32xf32> to vector<8x32xf32>
    %c0_2 = arith.constant 0 : index
    %c0_3 = arith.constant 0 : index
    %c0_4 = arith.constant 0 : index
    %2 = vector.load %arg2[%c0_2, %c0_3, %c0_4] : memref<1x8x32xf32, #tpu.memory_space<vmem>>, vector<1x8x32xf32>
    %3 = vector.shape_cast %2 : vector<1x8x32xf32> to vector<8x32xf32>
    %c0_5 = arith.constant 0 : index
    %c0_6 = arith.constant 0 : index
    %c0_7 = arith.constant 0 : index
    %4 = vector.load %arg3[%c0_5, %c0_6, %c0_7] : memref<1x8x32xf32, #tpu.memory_space<vmem>>, vector<1x8x32xf32>
    %5 = vector.shape_cast %4 : vector<1x8x32xf32> to vector<8x32xf32>
    %c0_8 = arith.constant 0 : index
    %c0_9 = arith.constant 0 : index
    %6 = vector.load %arg4[%c0_8, %c0_9] : memref<32x32xf32, #tpu.memory_space<vmem>>, vector<32x32xf32>
    %cst = arith.constant dense<0.000000e+00> : vector<8x32xf32>
    %7 = tpu.matmul %1, %6, %cst {dimension_numbers = #tpu.dot_dimension_numbers<[1], [0], [0], [1], [0, 0, 1, 1], [], []>} : vector<8x32xf32>, vector<32x32xf32>, vector<8x32xf32> -> vector<8x32xf32>
    %c0_10 = arith.constant 0 : index
    %c0_11 = arith.constant 0 : index
    %8 = vector.load %arg5[%c0_10, %c0_11] : memref<32x32xf32, #tpu.memory_space<vmem>>, vector<32x32xf32>
    %cst_12 = arith.constant dense<0.000000e+00> : vector<8x32xf32>
    %9 = tpu.matmul %3, %8, %cst_12 {dimension_numbers = #tpu.dot_dimension_numbers<[1], [0], [0], [1], [0, 0, 1, 1], [], []>} : vector<8x32xf32>, vector<32x32xf32>, vector<8x32xf32> -> vector<8x32xf32>
    %c0_13 = arith.constant 0 : index
    %c0_14 = arith.constant 0 : index
    %10 = vector.load %arg6[%c0_13, %c0_14] : memref<32x8xf32, #tpu.memory_space<vmem>>, vector<32x8xf32>
    %cst_15 = arith.constant dense<0.000000e+00> : vector<8x8xf32>
    %11 = tpu.matmul %5, %10, %cst_15 {dimension_numbers = #tpu.dot_dimension_numbers<[1], [0], [0], [1], [0, 0, 1, 1], [], []>} : vector<8x32xf32>, vector<32x8xf32>, vector<8x8xf32> -> vector<8x8xf32>
    %cst_16 = arith.constant 0.000000e+00 : f32
    %12 = vector.broadcast %cst_16 : f32 to vector<8x8xf32>
    %13 = vector.extract_strided_slice %7 {offsets = [0, 0], sizes = [8, 8], strides = [1, 1]} : vector<8x32xf32> to vector<8x8xf32>
    %14 = vector.extract_strided_slice %9 {offsets = [0, 0], sizes = [8, 8], strides = [1, 1]} : vector<8x32xf32> to vector<8x8xf32>
    %15 = tpu.transpose %14, [1, 0] : vector<8x8xf32> -> vector<8x8xf32>
    %cst_17 = arith.constant dense<0.000000e+00> : vector<8x8xf32>
    %16 = tpu.matmul %13, %15, %cst_17 {dimension_numbers = #tpu.dot_dimension_numbers<[1], [0], [0], [1], [0, 0, 1, 1], [], []>} : vector<8x8xf32>, vector<8x8xf32>, vector<8x8xf32> -> vector<8x8xf32>
    %cst_18 = arith.constant 0.353553385 : f32
    %17 = vector.broadcast %cst_18 : f32 to vector<8x8xf32>
    %18 = arith.mulf %16, %17 : vector<8x8xf32>
    %cst_19 = arith.constant dense<0xFF800000> : vector<8xf32>
    %19 = vector.multi_reduction <maximumf>, %18, %cst_19 [1] : vector<8x8xf32> to vector<8xf32>
    %20 = vector.shape_cast %19 : vector<8xf32> to vector<8x1xf32>
    %21 = vector.broadcast %20 : vector<8x1xf32> to vector<8x8xf32>
    %22 = arith.subf %18, %21 : vector<8x8xf32>
    %23 = math.exp %22 : vector<8x8xf32>
    %cst_20 = arith.constant dense<0.000000e+00> : vector<8xf32>
    %24 = vector.multi_reduction <add>, %23, %cst_20 [1] : vector<8x8xf32> to vector<8xf32>
    %25 = vector.shape_cast %24 : vector<8xf32> to vector<8x1xf32>
    %26 = vector.broadcast %25 : vector<8x1xf32> to vector<8x8xf32>
    %27 = arith.divf %23, %26 : vector<8x8xf32>
    %c0_21 = arith.constant 0 : index
    %c0_22 = arith.constant 0 : index
    %c0_23 = arith.constant 0 : index
    %c0_24 = arith.constant 0 : index
    %28 = vector.load %arg9[%c0_21, %c0_22, %c0_23, %c0_24] : memref<1x4x8x8xf32, #tpu.memory_space<vmem>>, vector<1x1x8x8xf32>
    %29 = vector.shape_cast %28 : vector<1x1x8x8xf32> to vector<8x8xf32>
    %30 = vector.shape_cast %27 : vector<8x8xf32> to vector<1x1x8x8xf32>
    tpu.vector_store %arg9[%c0_21, %c0_22, %c0_23, %c0_24], %30 {strides = array<i32>} : memref<1x4x8x8xf32, #tpu.memory_space<vmem>>, vector<1x1x8x8xf32>,
    %31 = arith.addf %12, %27 : vector<8x8xf32>
    %32 = vector.extract_strided_slice %7 {offsets = [0, 8], sizes = [8, 8], strides = [1, 1]} : vector<8x32xf32> to vector<8x8xf32>
    %33 = vector.extract_strided_slice %9 {offsets = [0, 8], sizes = [8, 8], strides = [1, 1]} : vector<8x32xf32> to vector<8x8xf32>
    %34 = tpu.transpose %33, [1, 0] : vector<8x8xf32> -> vector<8x8xf32>
    %cst_25 = arith.constant dense<0.000000e+00> : vector<8x8xf32>
    %35 = tpu.matmul %32, %34, %cst_25 {dimension_numbers = #tpu.dot_dimension_numbers<[1], [0], [0], [1], [0, 0, 1, 1], [], []>} : vector<8x8xf32>, vector<8x8xf32>, vector<8x8xf32> -> vector<8x8xf32>
    %cst_26 = arith.constant 0.353553385 : f32
    %36 = vector.broadcast %cst_26 : f32 to vector<8x8xf32>
    %37 = arith.mulf %35, %36 : vector<8x8xf32>
    %cst_27 = arith.constant dense<0xFF800000> : vector<8xf32>
    %38 = vector.multi_reduction <maximumf>, %37, %cst_27 [1] : vector<8x8xf32> to vector<8xf32>
    %39 = vector.shape_cast %38 : vector<8xf32> to vector<8x1xf32>
    %40 = vector.broadcast %39 : vector<8x1xf32> to vector<8x8xf32>
    %41 = arith.subf %37, %40 : vector<8x8xf32>
    %42 = math.exp %41 : vector<8x8xf32>
    %cst_28 = arith.constant dense<0.000000e+00> : vector<8xf32>
    %43 = vector.multi_reduction <add>, %42, %cst_28 [1] : vector<8x8xf32> to vector<8xf32>
    %44 = vector.shape_cast %43 : vector<8xf32> to vector<8x1xf32>
    %45 = vector.broadcast %44 : vector<8x1xf32> to vector<8x8xf32>
    %46 = arith.divf %42, %45 : vector<8x8xf32>
    %c0_29 = arith.constant 0 : index
    %c1 = arith.constant 1 : index
    %c0_30 = arith.constant 0 : index
    %c0_31 = arith.constant 0 : index
    %47 = vector.load %arg9[%c0_29, %c1, %c0_30, %c0_31] : memref<1x4x8x8xf32, #tpu.memory_space<vmem>>, vector<1x1x8x8xf32>
    %48 = vector.shape_cast %47 : vector<1x1x8x8xf32> to vector<8x8xf32>
    %49 = vector.shape_cast %46 : vector<8x8xf32> to vector<1x1x8x8xf32>
    tpu.vector_store %arg9[%c0_29, %c1, %c0_30, %c0_31], %49 {strides = array<i32>} : memref<1x4x8x8xf32, #tpu.memory_space<vmem>>, vector<1x1x8x8xf32>,
    %50 = arith.addf %31, %46 : vector<8x8xf32>
    %51 = vector.extract_strided_slice %7 {offsets = [0, 16], sizes = [8, 8], strides = [1, 1]} : vector<8x32xf32> to vector<8x8xf32>
    %52 = vector.extract_strided_slice %9 {offsets = [0, 16], sizes = [8, 8], strides = [1, 1]} : vector<8x32xf32> to vector<8x8xf32>
    %53 = tpu.transpose %52, [1, 0] : vector<8x8xf32> -> vector<8x8xf32>
    %cst_32 = arith.constant dense<0.000000e+00> : vector<8x8xf32>
    %54 = tpu.matmul %51, %53, %cst_32 {dimension_numbers = #tpu.dot_dimension_numbers<[1], [0], [0], [1], [0, 0, 1, 1], [], []>} : vector<8x8xf32>, vector<8x8xf32>, vector<8x8xf32> -> vector<8x8xf32>
    %cst_33 = arith.constant 0.353553385 : f32
    %55 = vector.broadcast %cst_33 : f32 to vector<8x8xf32>
    %56 = arith.mulf %54, %55 : vector<8x8xf32>
    %cst_34 = arith.constant dense<0xFF800000> : vector<8xf32>
    %57 = vector.multi_reduction <maximumf>, %56, %cst_34 [1] : vector<8x8xf32> to vector<8xf32>
    %58 = vector.shape_cast %57 : vector<8xf32> to vector<8x1xf32>
    %59 = vector.broadcast %58 : vector<8x1xf32> to vector<8x8xf32>
    %60 = arith.subf %56, %59 : vector<8x8xf32>
    %61 = math.exp %60 : vector<8x8xf32>
    %cst_35 = arith.constant dense<0.000000e+00> : vector<8xf32>
    %62 = vector.multi_reduction <add>, %61, %cst_35 [1] : vector<8x8xf32> to vector<8xf32>
    %63 = vector.shape_cast %62 : vector<8xf32> to vector<8x1xf32>
    %64 = vector.broadcast %63 : vector<8x1xf32> to vector<8x8xf32>
    %65 = arith.divf %61, %64 : vector<8x8xf32>
    %c0_36 = arith.constant 0 : index
    %c2 = arith.constant 2 : index
    %c0_37 = arith.constant 0 : index
    %c0_38 = arith.constant 0 : index
    %66 = vector.load %arg9[%c0_36, %c2, %c0_37, %c0_38] : memref<1x4x8x8xf32, #tpu.memory_space<vmem>>, vector<1x1x8x8xf32>
    %67 = vector.shape_cast %66 : vector<1x1x8x8xf32> to vector<8x8xf32>
    %68 = vector.shape_cast %65 : vector<8x8xf32> to vector<1x1x8x8xf32>
    tpu.vector_store %arg9[%c0_36, %c2, %c0_37, %c0_38], %68 {strides = array<i32>} : memref<1x4x8x8xf32, #tpu.memory_space<vmem>>, vector<1x1x8x8xf32>,
    %69 = arith.addf %50, %65 : vector<8x8xf32>
    %70 = vector.extract_strided_slice %7 {offsets = [0, 24], sizes = [8, 8], strides = [1, 1]} : vector<8x32xf32> to vector<8x8xf32>
    %71 = vector.extract_strided_slice %9 {offsets = [0, 24], sizes = [8, 8], strides = [1, 1]} : vector<8x32xf32> to vector<8x8xf32>
    %72 = tpu.transpose %71, [1, 0] : vector<8x8xf32> -> vector<8x8xf32>
    %cst_39 = arith.constant dense<0.000000e+00> : vector<8x8xf32>
    %73 = tpu.matmul %70, %72, %cst_39 {dimension_numbers = #tpu.dot_dimension_numbers<[1], [0], [0], [1], [0, 0, 1, 1], [], []>} : vector<8x8xf32>, vector<8x8xf32>, vector<8x8xf32> -> vector<8x8xf32>
    %cst_40 = arith.constant 0.353553385 : f32
    %74 = vector.broadcast %cst_40 : f32 to vector<8x8xf32>
    %75 = arith.mulf %73, %74 : vector<8x8xf32>
    %cst_41 = arith.constant dense<0xFF800000> : vector<8xf32>
    %76 = vector.multi_reduction <maximumf>, %75, %cst_41 [1] : vector<8x8xf32> to vector<8xf32>
    %77 = vector.shape_cast %76 : vector<8xf32> to vector<8x1xf32>
    %78 = vector.broadcast %77 : vector<8x1xf32> to vector<8x8xf32>
    %79 = arith.subf %75, %78 : vector<8x8xf32>
    %80 = math.exp %79 : vector<8x8xf32>
    %cst_42 = arith.constant dense<0.000000e+00> : vector<8xf32>
    %81 = vector.multi_reduction <add>, %80, %cst_42 [1] : vector<8x8xf32> to vector<8xf32>
    %82 = vector.shape_cast %81 : vector<8xf32> to vector<8x1xf32>
    %83 = vector.broadcast %82 : vector<8x1xf32> to vector<8x8xf32>
    %84 = arith.divf %80, %83 : vector<8x8xf32>
    %c0_43 = arith.constant 0 : index
    %c3 = arith.constant 3 : index
    %c0_44 = arith.constant 0 : index
    %c0_45 = arith.constant 0 : index
    %85 = vector.load %arg9[%c0_43, %c3, %c0_44, %c0_45] : memref<1x4x8x8xf32, #tpu.memory_space<vmem>>, vector<1x1x8x8xf32>
    %86 = vector.shape_cast %85 : vector<1x1x8x8xf32> to vector<8x8xf32>
    %87 = vector.shape_cast %84 : vector<8x8xf32> to vector<1x1x8x8xf32>
    tpu.vector_store %arg9[%c0_43, %c3, %c0_44, %c0_45], %87 {strides = array<i32>} : memref<1x4x8x8xf32, #tpu.memory_space<vmem>>, vector<1x1x8x8xf32>,
    %88 = arith.addf %69, %84 : vector<8x8xf32>
    %cst_46 = arith.constant 2.500000e-01 : f32
    %89 = vector.broadcast %cst_46 : f32 to vector<8x8xf32>
    %90 = arith.mulf %88, %89 : vector<8x8xf32>
    %cst_47 = arith.constant dense<0.000000e+00> : vector<8x8xf32>
    %91 = tpu.matmul %90, %11, %cst_47 {dimension_numbers = #tpu.dot_dimension_numbers<[1], [0], [0], [1], [0, 0, 1, 1], [], []>} : vector<8x8xf32>, vector<8x8xf32>, vector<8x8xf32> -> vector<8x8xf32>
    %c0_48 = arith.constant 0 : index
    %c0_49 = arith.constant 0 : index
    %92 = vector.load %arg7[%c0_48, %c0_49] : memref<8x32xf32, #tpu.memory_space<vmem>>, vector<8x32xf32>
    %cst_50 = arith.constant dense<0.000000e+00> : vector<8x32xf32>
    %93 = tpu.matmul %91, %92, %cst_50 {dimension_numbers = #tpu.dot_dimension_numbers<[1], [0], [0], [1], [0, 0, 1, 1], [], []>} : vector<8x8xf32>, vector<8x32xf32>, vector<8x32xf32> -> vector<8x32xf32>
    %c0_51 = arith.constant 0 : index
    %c0_52 = arith.constant 0 : index
    %c0_53 = arith.constant 0 : index
    %94 = vector.load %arg8[%c0_51, %c0_52, %c0_53] : memref<1x8x32xf32, #tpu.memory_space<vmem>>, vector<1x8x32xf32>
    %95 = vector.shape_cast %94 : vector<1x8x32xf32> to vector<8x32xf32>
    %96 = vector.shape_cast %93 : vector<8x32xf32> to vector<1x8x32xf32>
    tpu.vector_store %arg8[%c0_51, %c0_52, %c0_53], %96 {strides = array<i32>} : memref<1x8x32xf32, #tpu.memory_space<vmem>>, vector<1x8x32xf32>,
    return
  }
  func.func @transform_0(%arg0: i32) -> (i32, i32, i32) {
    %c0_i32 = arith.constant 0 : i32
    %c0_i32_0 = arith.constant 0 : i32
    %c0_i32_1 = arith.constant 0 : i32
    return %arg0, %c0_i32, %c0_i32_0 : i32, i32, i32
  }
  func.func @transform_1(%arg0: i32) -> (i32, i32, i32) {
    %c0_i32 = arith.constant 0 : i32
    %c0_i32_0 = arith.constant 0 : i32
    %c0_i32_1 = arith.constant 0 : i32
    return %arg0, %c0_i32, %c0_i32_0 : i32, i32, i32
  }
  func.func @transform_2(%arg0: i32) -> (i32, i32, i32) {
    %c0_i32 = arith.constant 0 : i32
    %c0_i32_0 = arith.constant 0 : i32
    %c0_i32_1 = arith.constant 0 : i32
    return %arg0, %c0_i32, %c0_i32_0 : i32, i32, i32
  }
  func.func @transform_3(%arg0: i32) -> (i32, i32) {
    %c0_i32 = arith.constant 0 : i32
    %c0_i32_0 = arith.constant 0 : i32
    %c0_i32_1 = arith.constant 0 : i32
    return %c0_i32, %c0_i32_0 : i32, i32
  }
  func.func @transform_4(%arg0: i32) -> (i32, i32) {
    %c0_i32 = arith.constant 0 : i32
    %c0_i32_0 = arith.constant 0 : i32
    %c0_i32_1 = arith.constant 0 : i32
    return %c0_i32, %c0_i32_0 : i32, i32
  }
  func.func @transform_5(%arg0: i32) -> (i32, i32) {
    %c0_i32 = arith.constant 0 : i32
    %c0_i32_0 = arith.constant 0 : i32
    %c0_i32_1 = arith.constant 0 : i32
    return %c0_i32, %c0_i32_0 : i32, i32
  }
  func.func @transform_6(%arg0: i32) -> (i32, i32) {
    %c0_i32 = arith.constant 0 : i32
    %c0_i32_0 = arith.constant 0 : i32
    %c0_i32_1 = arith.constant 0 : i32
    return %c0_i32, %c0_i32_0 : i32, i32
  }
  func.func @transform_7(%arg0: i32) -> (i32, i32, i32) {
    %c0_i32 = arith.constant 0 : i32
    %c0_i32_0 = arith.constant 0 : i32
    %c0_i32_1 = arith.constant 0 : i32
    return %arg0, %c0_i32, %c0_i32_0 : i32, i32, i32
  }
  func.func @transform_8(%arg0: i32) -> (i32, i32, i32, i32) {
    %c0_i32 = arith.constant 0 : i32
    %c0_i32_0 = arith.constant 0 : i32
    %c0_i32_1 = arith.constant 0 : i32
    %c0_i32_2 = arith.constant 0 : i32
    return %arg0, %c0_i32, %c0_i32_0, %c0_i32_1 : i32, i32, i32, i32
  }
}

</mosaic_0001>

<llo_original>
// kernel: tpu_custom_call.1
$region0: #{tpu_custom_call.1}
  #allocation0 [shape = 'u32[]', space=smem, size = 0x4, offset = 0x4, fixed_abs, tag = 'smem constant byte address 0x4 - core index']
  #allocation1 [shape = 'u32[144,128]{1,0:T(1,128)}', space=vmem, size = 0x12000, scoped, tag = 'internal scratch']
  %s0 = inlined_call_operand.vmem [shape: f32[2,8,32], index: 0, kind: input, shape index: {}]
  %s1 = inlined_call_operand.hbm [shape: f32[2,8,32], index: 1, kind: input, shape index: {}]
  %s2 = inlined_call_operand.hbm [shape: f32[2,8,32], index: 2, kind: input, shape index: {}]
  %s3 = inlined_call_operand.vmem [shape: f32[32,32], index: 3, kind: input, shape index: {}]
  %s4 = inlined_call_operand.hbm [shape: f32[32,32], index: 4, kind: input, shape index: {}]
  %s5 = inlined_call_operand.vmem [shape: f32[32,8], index: 5, kind: input, shape index: {}]
  %s6 = inlined_call_operand.hbm [shape: f32[8,32], index: 6, kind: input, shape index: {}]
  %s7 = inlined_call_operand.hbm [shape: f32[2,8,32], index: 7, kind: output, shape index: {0}]
  %s8 = inlined_call_operand.hbm [shape: f32[2,4,8,8], index: 8, kind: output, shape index: {1}]
  %9 = xla_tuple %s7, %s8
  %s10 = sld [smem:[#allocation0]]
  $region85: #{tpu_custom_call.1} parent=0
    _
  %s12 = ssub.s32 1, %s10
  %s13 = scalar_select 0, %s12, %s10
  $region1: #{tpu_custom_call.1} parent=0
    #allocation2 [shape = 'u8[8192]{0}', space=vmem, size = 0x2000, scoped, tag = 'input window, operand 1']
    #allocation3 [shape = 's32[2]{0}', space=sflag, size = 0x8, scoped, tag = 'scoped memory for tpu_custom_call.1']
    #allocation4 [shape = 's32[2]{0}', space=sflag, size = 0x8, scoped, tag = 'scoped memory for tpu_custom_call.1']
    #allocation5 [shape = 'u8[8192]{0}', space=vmem, size = 0x2000, scoped, tag = 'input window, operand 2']
    #allocation6 [shape = 's32[2]{0}', space=sflag, size = 0x8, scoped, tag = 'scoped memory for tpu_custom_call.1']
    #allocation7 [shape = 'u8[16384]{0}', space=vmem, size = 0x4000, scoped, tag = 'input window, operand 4, single buffered']
    #allocation8 [shape = 'u8[4096]{0}', space=vmem, size = 0x1000, scoped, tag = 'input window, operand 6, single buffered']
    #allocation9 [shape = 's32[1]{0}', space=sflag, size = 0x4, scoped, tag = 'scoped memory for tpu_custom_call.1']
    #allocation10 [shape = 'u8[8192]{0}', space=vmem, size = 0x2000, scoped, tag = 'output window, operand 0']
    #allocation11 [shape = 'u8[32768]{0}', space=vmem, size = 0x8000, scoped, tag = 'output window, operand 1']
    #allocation12 [shape = 's32[2]{0}', space=sflag, size = 0x8, scoped, tag = 'scoped memory for tpu_custom_call.1']
    %14 = vsyncpa [#allocation3], 0
    %s15 = scalar_lea.sflag [#allocation3], 1
    %16 = vsyncpa %s15, 0
    %17 = vsyncpa [#allocation6], 0
    %s18 = scalar_lea.sflag [#allocation6], 1
    %19 = vsyncpa %s18, 0
    %20 = vsyncpa [#allocation9], 0
    %21 = vsyncpa [#allocation4], 0
    %s22 = scalar_lea.sflag [#allocation4], 1
    %23 = vsyncpa %s22, 0
    %24 = vsyncpa [#allocation12], 0
    %s25 = scalar_lea.sflag [#allocation12], 1
    %26 = vsyncpa %s25, 0
    loop: start=0, step=1, limit=4
    $region2: #{tpu_custom_call.1} parent=1 // loop_pre_header
      _
    $region3: #{tpu_custom_call.1} parent=1 // loop_header
      %s28 = sphi 0, %s32
      %p29 = scmp.ge.s32.totalorder %s28, 4
      %s38 = sphi 0, %s40
      %s41 = sphi 0, %s38
      %s42 = sphi 0, %s41
      %s58 = sphi 0, %s42
      %s64 = sphi 0, %s66
      %s67 = sphi 0, %s64
      %s68 = sphi 0, %s67
      %s84 = sphi 0, %s68
      %s90 = sphi 0, %s92
      %s93 = sphi 0, %s90
      %s94 = sphi 0, %s93
      %s110 = sphi 0, %s94
      %s114 = sphi 0, %s114
      %s116 = sphi 0, %s114
      %s117 = sphi 0, %s116
      %s131 = sphi 0, %s117
      %s135 = sphi 0, %s135
      %s137 = sphi 0, %s135
      %s138 = sphi 0, %s137
      %s152 = sphi 0, %s138
      %s156 = sphi 0, %s156
      %s158 = sphi 0, %s156
      %s159 = sphi 0, %s158
      %s173 = sphi 0, %s159
      %s177 = sphi 0, %s177
      %s179 = sphi 0, %s177
      %s180 = sphi 0, %s179
      %s194 = sphi 0, %s180
      %s200 = sphi 0, %s202
      %s203 = sphi 0, %s200
      %s204 = sphi 0, %s203
      %s220 = sphi 0, %s204
      %s226 = sphi 0, %s228
      %s229 = sphi 0, %s226
      %s230 = sphi 0, %s229
      %s246 = sphi 0, %s230
    $region4: #{tpu_custom_call.1} parent=1 // loop_header_branch
      %31 = sbr.rel (%p29) target = $region8
    $region5: #{tpu_custom_call.1} parent=1 // loop_body
      %s33 = ssub.s32 %s28, 1
      %s34 = ssub.s32 %s28, 2
      %s35 = sadd.s32 %s28, 1
      %s36 = ssub.s32 %s28, %s35
      %p37 = scmp.eq.s32.totalorder %s36, 0
      %s39 = sadd.s32 %s38, 1
      %s40 = scalar_select %p37, %s38, %s39
      %p43 = pneg %p37
      %p44 = scmp.eq.s32.totalorder %s28, 1
      %p45 = por %p43, %p44
      %p46 = scmp.ne.s32.totalorder %s38, %s41
      %p47 = scmp.eq.s32.totalorder %s28, 0
      %p48 = por %p46, %p47
      %p49 = scmp.ne.s32.totalorder %s38, %s41
      %p50 = scmp.eq.s32.totalorder %s33, 1
      %p51 = por %p49, %p50
      %p52 = scmp.ne.s32.totalorder %s41, %s42
      %p53 = scmp.eq.s32.totalorder %s33, 0
      %p54 = por %p52, %p53
      %p55 = scmp.ne.s32.totalorder %s41, %s42
      %p56 = scmp.eq.s32.totalorder %s34, 1
      %p57 = por %p55, %p56
      %p59 = scmp.ne.s32.totalorder %s42, %s58
      %p60 = scmp.eq.s32.totalorder %s34, 0
      %p61 = por %p59, %p60
      %s62 = ssub.s32 %s28, %s35
      %p63 = scmp.eq.s32.totalorder %s62, 0
      %s65 = sadd.s32 %s64, 1
      %s66 = scalar_select %p63, %s64, %s65
      %p69 = pneg %p63
      %p70 = scmp.eq.s32.totalorder %s28, 1
      %p71 = por %p69, %p70
      %p72 = scmp.ne.s32.totalorder %s64, %s67
      %p73 = scmp.eq.s32.totalorder %s28, 0
      %p74 = por %p72, %p73
      %p75 = scmp.ne.s32.totalorder %s64, %s67
      %p76 = scmp.eq.s32.totalorder %s33, 1
      %p77 = por %p75, %p76
      %p78 = scmp.ne.s32.totalorder %s67, %s68
      %p79 = scmp.eq.s32.totalorder %s33, 0
      %p80 = por %p78, %p79
      %p81 = scmp.ne.s32.totalorder %s67, %s68
      %p82 = scmp.eq.s32.totalorder %s34, 1
      %p83 = por %p81, %p82
      %p85 = scmp.ne.s32.totalorder %s68, %s84
      %p86 = scmp.eq.s32.totalorder %s34, 0
      %p87 = por %p85, %p86
      %s88 = ssub.s32 %s28, %s35
      %p89 = scmp.eq.s32.totalorder %s88, 0
      %s91 = sadd.s32 %s90, 1
      %s92 = scalar_select %p89, %s90, %s91
      %p95 = pneg %p89
      %p96 = scmp.eq.s32.totalorder %s28, 1
      %p97 = por %p95, %p96
      %p98 = scmp.ne.s32.totalorder %s90, %s93
      %p99 = scmp.eq.s32.totalorder %s28, 0
      %p100 = por %p98, %p99
      %p101 = scmp.ne.s32.totalorder %s90, %s93
      %p102 = scmp.eq.s32.totalorder %s33, 1
      %p103 = por %p101, %p102
      %p104 = scmp.ne.s32.totalorder %s93, %s94
      %p105 = scmp.eq.s32.totalorder %s33, 0
      %p106 = por %p104, %p105
      %p107 = scmp.ne.s32.totalorder %s93, %s94
      %p108 = scmp.eq.s32.totalorder %s34, 1
      %p109 = por %p107, %p108
      %p111 = scmp.ne.s32.totalorder %s94, %s110
      %p112 = scmp.eq.s32.totalorder %s34, 0
      %p113 = por %p111, %p112
      %s115 = sadd.s32 %s114, 1
      %p118 = scmp.eq.s32.totalorder %s28, 1
      %p119 = scmp.ne.s32.totalorder %s114, %s116
      %p120 = scmp.eq.s32.totalorder %s28, 0
      %p121 = por %p119, %p120
      %p122 = scmp.ne.s32.totalorder %s114, %s116
      %p123 = scmp.eq.s32.totalorder %s33, 1
      %p124 = por %p122, %p123
      %p125 = scmp.ne.s32.totalorder %s116, %s117
      %p126 = scmp.eq.s32.totalorder %s33, 0
      %p127 = por %p125, %p126
      %p128 = scmp.ne.s32.totalorder %s116, %s117
      %p129 = scmp.eq.s32.totalorder %s34, 1
      %p130 = por %p128, %p129
      %p132 = scmp.ne.s32.totalorder %s117, %s131
      %p133 = scmp.eq.s32.totalorder %s34, 0
      %p134 = por %p132, %p133
      %s136 = sadd.s32 %s135, 1
      %p139 = scmp.eq.s32.totalorder %s28, 1
      %p140 = scmp.ne.s32.totalorder %s135, %s137
      %p141 = scmp.eq.s32.totalorder %s28, 0
      %p142 = por %p140, %p141
      %p143 = scmp.ne.s32.totalorder %s135, %s137
      %p144 = scmp.eq.s32.totalorder %s33, 1
      %p145 = por %p143, %p144
      %p146 = scmp.ne.s32.totalorder %s137, %s138
      %p147 = scmp.eq.s32.totalorder %s33, 0
      %p148 = por %p146, %p147
      %p149 = scmp.ne.s32.totalorder %s137, %s138
      %p150 = scmp.eq.s32.totalorder %s34, 1
      %p151 = por %p149, %p150
      %p153 = scmp.ne.s32.totalorder %s138, %s152
      %p154 = scmp.eq.s32.totalorder %s34, 0
      %p155 = por %p153, %p154
      %s157 = sadd.s32 %s156, 1
      %p160 = scmp.eq.s32.totalorder %s28, 1
      %p161 = scmp.ne.s32.totalorder %s156, %s158
      %p162 = scmp.eq.s32.totalorder %s28, 0
      %p163 = por %p161, %p162
      %p164 = scmp.ne.s32.totalorder %s156, %s158
      %p165 = scmp.eq.s32.totalorder %s33, 1
      %p166 = por %p164, %p165
      %p167 = scmp.ne.s32.totalorder %s158, %s159
      %p168 = scmp.eq.s32.totalorder %s33, 0
      %p169 = por %p167, %p168
      %p170 = scmp.ne.s32.totalorder %s158, %s159
      %p171 = scmp.eq.s32.totalorder %s34, 1
      %p172 = por %p170, %p171
      %p174 = scmp.ne.s32.totalorder %s159, %s173
      %p175 = scmp.eq.s32.totalorder %s34, 0
      %p176 = por %p174, %p175
      %s178 = sadd.s32 %s177, 1
      %p181 = scmp.eq.s32.totalorder %s28, 1
      %p182 = scmp.ne.s32.totalorder %s177, %s179
      %p183 = scmp.eq.s32.totalorder %s28, 0
      %p184 = por %p182, %p183
      %p185 = scmp.ne.s32.totalorder %s177, %s179
      %p186 = scmp.eq.s32.totalorder %s33, 1
      %p187 = por %p185, %p186
      %p188 = scmp.ne.s32.totalorder %s179, %s180
      %p189 = scmp.eq.s32.totalorder %s33, 0
      %p190 = por %p188, %p189
      %p191 = scmp.ne.s32.totalorder %s179, %s180
      %p192 = scmp.eq.s32.totalorder %s34, 1
      %p193 = por %p191, %p192
      %p195 = scmp.ne.s32.totalorder %s180, %s194
      %p196 = scmp.eq.s32.totalorder %s34, 0
      %p197 = por %p195, %p196
      %s198 = ssub.s32 %s28, %s35
      %p199 = scmp.eq.s32.totalorder %s198, 0
      %s201 = sadd.s32 %s200, 1
      %s202 = scalar_select %p199, %s200, %s201
      %p205 = pneg %p199
      %p206 = scmp.eq.s32.totalorder %s28, 1
      %p207 = por %p205, %p206
      %p208 = scmp.ne.s32.totalorder %s200, %s203
      %p209 = scmp.eq.s32.totalorder %s28, 0
      %p210 = por %p208, %p209
      %p211 = scmp.ne.s32.totalorder %s200, %s203
      %p212 = scmp.eq.s32.totalorder %s33, 1
      %p213 = por %p211, %p212
      %p214 = scmp.ne.s32.totalorder %s203, %s204
      %p215 = scmp.eq.s32.totalorder %s33, 0
      %p216 = por %p214, %p215
      %p217 = scmp.ne.s32.totalorder %s203, %s204
      %p218 = scmp.eq.s32.totalorder %s34, 1
      %p219 = por %p217, %p218
      %p221 = scmp.ne.s32.totalorder %s204, %s220
      %p222 = scmp.eq.s32.totalorder %s34, 0
      %p223 = por %p221, %p222
      %s224 = ssub.s32 %s28, %s35
      %p225 = scmp.eq.s32.totalorder %s224, 0
      %s227 = sadd.s32 %s226, 1
      %s228 = scalar_select %p225, %s226, %s227
      %p231 = pneg %p225
      %p232 = scmp.eq.s32.totalorder %s28, 1
      %p233 = por %p231, %p232
      %p234 = scmp.ne.s32.totalorder %s226, %s229
      %p235 = scmp.eq.s32.totalorder %s28, 0
      %p236 = por %p234, %p235
      %p237 = scmp.ne.s32.totalorder %s226, %s229
      %p238 = scmp.eq.s32.totalorder %s33, 1
      %p239 = por %p237, %p238
      %p240 = scmp.ne.s32.totalorder %s229, %s230
      %p241 = scmp.eq.s32.totalorder %s33, 0
      %p242 = por %p240, %p241
      %p243 = scmp.ne.s32.totalorder %s229, %s230
      %p244 = scmp.eq.s32.totalorder %s34, 1
      %p245 = por %p243, %p244
      %p247 = scmp.ne.s32.totalorder %s230, %s246
      %p248 = scmp.eq.s32.totalorder %s34, 0
      %p249 = por %p247, %p248
      %p250 = scmp.le.s32.totalorder 1, %s28
      %p251 = scmp.lt.s32.totalorder %s28, 3
      %p252 = pnand %p250, %p251
      %p253 = pneg %p252
      // Predicated region
      $region9: #{tpu_custom_call.1} parent=5 // pred_check
        _
      $region10: #{tpu_custom_call.1} parent=5 // pred_check_branch
        %255 = sbr.rel (%p252) target = $region12
      $region11: #{tpu_custom_call.1} parent=5 // pred_region
        %s256 = ssub.s32 %s28, 1
        // Predicated region
        $region13: #{tpu_custom_call.1} parent=11 // pred_check
          %p257 = pneg %p127
        $region14: #{tpu_custom_call.1} parent=11 // pred_check_branch
          %259 = sbr.rel (%p257) target = $region16
        $region15: #{tpu_custom_call.1} parent=11 // pred_region
          _
        $region16: #{tpu_custom_call.1} parent=11 // pred_fallthru
          _
        // Predicated region
        $region17: #{tpu_custom_call.1} parent=11 // pred_check
          %p260 = pneg %p148
        $region18: #{tpu_custom_call.1} parent=11 // pred_check_branch
          %262 = sbr.rel (%p260) target = $region20
        $region19: #{tpu_custom_call.1} parent=11 // pred_region
          %s264 = ssub.s32 512, 512
          %265 = vsyncadd [#allocation6], %s264
          %s266 = sshll.u32 [#allocation7], 4
          %s267 = int_to_ptr.vmem [resolvable:$true] %s266
          %272 = dma.hbm_to_vmem [thread:$0]  %s4, 512, %s267, [#allocation6], 128, 128, 8
        $region20: #{tpu_custom_call.1} parent=11 // pred_fallthru
          _
        // Predicated region
        $region21: #{tpu_custom_call.1} parent=11 // pred_check
          %p273 = pneg %p169
        $region22: #{tpu_custom_call.1} parent=11 // pred_check_branch
          %275 = sbr.rel (%p273) target = $region24
        $region23: #{tpu_custom_call.1} parent=11 // pred_region
          _
        $region24: #{tpu_custom_call.1} parent=11 // pred_fallthru
          _
        // Predicated region
        $region25: #{tpu_custom_call.1} parent=11 // pred_check
          %p276 = pneg %p190
        $region26: #{tpu_custom_call.1} parent=11 // pred_check_branch
          %278 = sbr.rel (%p276) target = $region28
        $region27: #{tpu_custom_call.1} parent=11 // pred_region
          %s280 = ssub.s32 128, 128
          %281 = vsyncadd [#allocation9], %s280
          %s283 = sshll.u32 [#allocation8], 4
          %s284 = int_to_ptr.vmem [resolvable:$true] %s283
          %286 = dma.hbm_to_vmem [thread:$0]  %s6, 128, %s284, [#allocation9]
        $region28: #{tpu_custom_call.1} parent=11 // pred_fallthru
          _
      $region12: #{tpu_custom_call.1} parent=5 // pred_fallthru
        _
      %p287 = scmp.lt.s32.totalorder %s28, 2
      // Predicated region
      $region29: #{tpu_custom_call.1} parent=5 // pred_check
        %p288 = pneg %p287
      $region30: #{tpu_custom_call.1} parent=5 // pred_check_branch
        %290 = sbr.rel (%p288) target = $region32
      $region31: #{tpu_custom_call.1} parent=5 // pred_region
        // Predicated region
        $region33: #{tpu_custom_call.1} parent=31 // pred_check
          %p291 = pneg %p48
        $region34: #{tpu_custom_call.1} parent=31 // pred_check_branch
          %293 = sbr.rel (%p291) target = $region36
        $region35: #{tpu_custom_call.1} parent=31 // pred_region
          %p294 = scmp.lt.s32.totalorder %s28, 1
          %s295 = scalar_select %p294, %s28, 1
          %s296 = smul.addr %s295, 8
          %s297 = scalar_lea.vmem %s0, %s296
        $region36: #{tpu_custom_call.1} parent=31 // pred_fallthru
          _
        // Predicated region
        $region37: #{tpu_custom_call.1} parent=31 // pred_check
          %p298 = pneg %p74
        $region38: #{tpu_custom_call.1} parent=31 // pred_check_branch
          %300 = sbr.rel (%p298) target = $region40
        $region39: #{tpu_custom_call.1} parent=31 // pred_region
          %s301 = sand.u32 %s64, 1
          %s302 = scalar_lea.sflag [#allocation3], %s301
          %s303 = sand.u32 %s64, 1
          %s304 = smul.addr %s303, 8
          %s305 = scalar_lea.vmem [#allocation2], %s304
          %s307 = ssub.s32 128, 128
          %308 = vsyncadd %s302, %s307
          %s309 = smul.addr %s28, 128
          %s310 = scalar_lea.hbm %s1, %s309
          %s312 = sshll.u32 %s305, 4
          %s313 = int_to_ptr.vmem [resolvable:$true] %s312
          %315 = dma.hbm_to_vmem [thread:$0]  %s310, 128, %s313, %s302
        $region40: #{tpu_custom_call.1} parent=31 // pred_fallthru
          _
        // Predicated region
        $region41: #{tpu_custom_call.1} parent=31 // pred_check
          %p316 = pneg %p100
        $region42: #{tpu_custom_call.1} parent=31 // pred_check_branch
          %318 = sbr.rel (%p316) target = $region44
        $region43: #{tpu_custom_call.1} parent=31 // pred_region
          %s319 = sand.u32 %s28, 1
          %s320 = scalar_lea.sflag [#allocation6], %s319
          %s321 = sand.u32 %s90, 1
          %s322 = smul.addr %s321, 8
          %s323 = scalar_lea.vmem [#allocation5], %s322
          %s325 = ssub.s32 128, 128
          %326 = vsyncadd %s320, %s325
          %s327 = smul.addr %s28, 128
          %s328 = scalar_lea.hbm %s2, %s327
          %s330 = sshll.u32 %s323, 4
          %s331 = int_to_ptr.vmem [resolvable:$true] %s330
          %333 = dma.hbm_to_vmem [thread:$0]  %s328, 128, %s331, %s320
        $region44: #{tpu_custom_call.1} parent=31 // pred_fallthru
          _
      $region32: #{tpu_custom_call.1} parent=5 // pred_fallthru
        _
      %p334 = scmp.le.s32.totalorder 1, %s28
      %p335 = scmp.lt.s32.totalorder %s28, 3
      %p336 = pnand %p334, %p335
      %p337 = pneg %p336
      // Predicated region
      $region45: #{tpu_custom_call.1} parent=5 // pred_check
        _
      $region46: #{tpu_custom_call.1} parent=5 // pred_check_branch
        %339 = sbr.rel (%p336) target = $region48
      $region47: #{tpu_custom_call.1} parent=5 // pred_region
        %s340 = ssub.s32 %s28, 1
        %s341 = sand.u32 %s67, 1
        %s342 = scalar_lea.sflag [#allocation3], %s341
        %s343 = sand.u32 %s67, 1
        %s344 = smul.addr %s343, 8
        %s345 = scalar_lea.vmem [#allocation2], %s344
        // Predicated region
        $region49: #{tpu_custom_call.1} parent=47 // pred_check
          %p346 = pneg %p80
        $region50: #{tpu_custom_call.1} parent=47 // pred_check_branch
          %348 = sbr.rel (%p346) target = $region52
        $region51: #{tpu_custom_call.1} parent=47 // pred_region
          %349 = dma.done %s342, 128
        $region52: #{tpu_custom_call.1} parent=47 // pred_fallthru
          _
        %s350 = sand.u32 %s33, 1
        %s351 = scalar_lea.sflag [#allocation6], %s350
        %s352 = sand.u32 %s93, 1
        %s353 = smul.addr %s352, 8
        %s354 = scalar_lea.vmem [#allocation5], %s353
        // Predicated region
        $region53: #{tpu_custom_call.1} parent=47 // pred_check
          %p355 = pneg %p106
        $region54: #{tpu_custom_call.1} parent=47 // pred_check_branch
          %357 = sbr.rel (%p355) target = $region56
        $region55: #{tpu_custom_call.1} parent=47 // pred_region
          %358 = dma.done %s351, 128
        $region56: #{tpu_custom_call.1} parent=47 // pred_fallthru
          _
        // Predicated region
        $region57: #{tpu_custom_call.1} parent=47 // pred_check
          %p359 = pneg %p148
        $region58: #{tpu_custom_call.1} parent=47 // pred_check_branch
          %361 = sbr.rel (%p359) target = $region60
        $region59: #{tpu_custom_call.1} parent=47 // pred_region
          %362 = dma.done [#allocation6], 512
        $region60: #{tpu_custom_call.1} parent=47 // pred_fallthru
          _
        // Predicated region
        $region61: #{tpu_custom_call.1} parent=47 // pred_check
          %p363 = pneg %p190
        $region62: #{tpu_custom_call.1} parent=47 // pred_check_branch
          %365 = sbr.rel (%p363) target = $region64
        $region63: #{tpu_custom_call.1} parent=47 // pred_region
          %366 = dma.done [#allocation9], 128
        $region64: #{tpu_custom_call.1} parent=47 // pred_fallthru
          _
        %p367 = scmp.lt.s32.totalorder %s33, 1
        %s368 = scalar_select %p367, %s33, 1
        %s369 = smul.addr %s368, 8
        %s370 = scalar_lea.vmem %s0, %s369
        %p371 = pneg %p54
        %p372 = pneg %p51
        %s373 = sand.u32 %s67, 1
        %s374 = scalar_lea.sflag [#allocation3], %s373
        %s375 = sand.u32 %s67, 1
        %s376 = smul.addr %s375, 8
        %s377 = scalar_lea.vmem [#allocation2], %s376
        %p378 = pneg %p80
        %p379 = pneg %p77
        %s380 = sand.u32 %s33, 1
        %s381 = scalar_lea.sflag [#allocation6], %s380
        %s382 = sand.u32 %s93, 1
        %s383 = smul.addr %s382, 8
        %s384 = scalar_lea.vmem [#allocation5], %s383
        %p385 = pneg %p106
        %p386 = pneg %p103
        %p387 = pneg %p127
        %p388 = pneg %p124
        %p389 = pneg %p148
        %p390 = pneg %p145
        %p391 = pneg %p169
        %p392 = pneg %p166
        %p393 = pneg %p190
        %p394 = pneg %p187
        %p395 = pneg %p216
        %p396 = pneg %p213
        %s397 = sand.u32 %s203, 1
        %s398 = scalar_lea.sflag [#allocation4], %s397
        %s399 = sand.u32 %s203, 1
        %s400 = smul.addr %s399, 8
        %s401 = scalar_lea.vmem [#allocation10], %s400
        %p402 = pneg %p242
        %p403 = pneg %p239
        %s404 = sand.u32 %s229, 1
        %s405 = scalar_lea.sflag [#allocation12], %s404
        %s406 = sand.u32 %s229, 1
        %s407 = smul.addr %s406, 32
        %s408 = scalar_lea.vmem [#allocation11], %s407
        %p409 = scmp.lt.s32.totalorder %s33, 1
        %s410 = scalar_select %p409, %s33, 1
        %s411 = smul.addr %s410, 8
        %s412 = scalar_lea.vmem %s0, %s411
        %v413 = vld [vmem:[%s412] sm:$0xff]
        %v414 = vld [vmem:[%s345] sm:$0xff]
        %v415 = vld [vmem:[%s354] sm:$0xff]
        %v416 = vld [vmem:[%s3] sm:$0xff]
        %v417 = vld [vmem:[%s3 + $0x8] sm:$0xff]
        %v418 = vld [vmem:[%s3 + $0x10] sm:$0xff]
        %v419 = vld [vmem:[%s3 + $0x18] sm:$0xff]
        %vm420 = vcmask 261120
        %v422 = vsel %vm420, %v413, 0
        %424 = vmatprep.subr.mxu0 0.0
        %425 = vmatpush1.msra.mxu0 %v416
        %426 = vmatprep.subr.mxu0 0.0
        %427 = vmatpush1.msra.mxu0 %v417
        %428 = vmatprep.subr.mxu0 0.0
        %429 = vmatpush1.msra.mxu0 %v418
        %430 = vmatprep.subr.mxu0 0.0
        %431 = vmatpush1.msra.mxu0 %v419
        %432 = vmatprep.subr.mxu0 0.0
        %433 = vmatpush1.msra.mxu0 0.0
        %434 = vmatprep.subr.mxu0 0.0
        %435 = vmatpush1.msra.mxu0 0.0
        %436 = vmatprep.subr.mxu0 0.0
        %437 = vmatpush1.msra.mxu0 0.0
        %438 = vmatprep.subr.mxu0 0.0
        %439 = vmatpush1.msra.mxu0 0.0
        %440 = vmatprep.subr.mxu0 0.0
        %441 = vmatpush1.msra.mxu0 0.0
        %442 = vmatprep.subr.mxu0 0.0
        %443 = vmatpush1.msra.mxu0 0.0
        %444 = vmatprep.subr.mxu0 0.0
        %445 = vmatpush1.msra.mxu0 0.0
        %446 = vmatprep.subr.mxu0 0.0
        %447 = vmatpush1.msra.mxu0 0.0
        %448 = vmatprep.subr.mxu0 0.0
        %449 = vmatpush1.msra.mxu0 0.0
        %450 = vmatprep.subr.mxu0 0.0
        %451 = vmatpush1.msra.mxu0 0.0
        %452 = vmatprep.subr.mxu0 0.0
        %453 = vmatpush1.msra.mxu0 0.0
        %454 = vmatprep.subr.mxu0 0.0
        %455 = vmatpush1.msra.mxu0 0.0
        %456 = vmatprep.subr.mxu0 0.0
        %457 = vmatpush1.msra.mxu0 0.0
        %458 = vmatprep.subr.mxu0 0.0
        %459 = vmatpush1.msra.mxu0 0.0
        %460 = vmatprep.subr.mxu0 0.0
        %461 = vmatpush1.msra.mxu0 0.0
        %462 = vmatprep.subr.mxu0 0.0
        %463 = vmatpush1.msra.mxu0 0.0
        %464 = vmatprep.subr.mxu0 0.0
        %465 = vmatpush1.msra.mxu0 0.0
        %466 = vmatprep.subr.mxu0 0.0
        %467 = vmatpush1.msra.mxu0 0.0
        %468 = vmatprep.subr.mxu0 0.0
        %469 = vmatpush1.msra.mxu0 0.0
        %470 = vmatprep.subr.mxu0 0.0
        %471 = vmatpush1.msra.mxu0 0.0
        %472 = vmatprep.subr.mxu0 0.0
        %473 = vmatpush1.msra.mxu0 0.0
        %474 = vmatprep.subr.mxu0 0.0
        %475 = vmatpush1.msra.mxu0 0.0
        %476 = vmatprep.subr.mxu0 0.0
        %477 = vmatpush1.msra.mxu0 0.0
        %478 = vmatprep.subr.mxu0 0.0
        %479 = vmatpush1.msra.mxu0 0.0
        %480 = vmatprep.subr.mxu0 0.0
        %481 = vmatpush1.msra.mxu0 0.0
        %482 = vmatprep.subr.mxu0 0.0
        %483 = vmatpush1.msra.mxu0 0.0
        %484 = vmatprep.subr.mxu0 0.0
        %485 = vmatpush1.msra.mxu0 0.0
        %486 = vmatprep.subr.mxu0 0.0
        %487 = vmatpush1.msra.mxu0 0.0
        %488 = vmatprep.mubr.f32.mxu0 0.0
        %489 = vmatmul.mubr.f32.gmra.mrb[0].mxu0 %v422
        %v490 = vpop.f32.mrb[0].mxu0
        %v491 = vadd.f32 0.0, %v490
        %v492 = vpop.f32.mrb[0].mxu0
        %493 = vdwg.mxu0
        %v494 = vld [vmem:[#allocation7] sm:$0xff]
        %v495 = vld [vmem:[#allocation7 + $0x8] sm:$0xff]
        %v496 = vld [vmem:[#allocation7 + $0x10] sm:$0xff]
        %v497 = vld [vmem:[#allocation7 + $0x18] sm:$0xff]
        %v499 = vsel %vm420, %v414, 0
        %501 = vmatprep.subr.mxu0 0.0
        %502 = vmatpush1.msra.mxu0 %v494
        %503 = vmatprep.subr.mxu0 0.0
        %504 = vmatpush1.msra.mxu0 %v495
        %505 = vmatprep.subr.mxu0 0.0
        %506 = vmatpush1.msra.mxu0 %v496
        %507 = vmatprep.subr.mxu0 0.0
        %508 = vmatpush1.msra.mxu0 %v497
        %509 = vmatprep.subr.mxu0 0.0
        %510 = vmatpush1.msra.mxu0 0.0
        %511 = vmatprep.subr.mxu0 0.0
        %512 = vmatpush1.msra.mxu0 0.0
        %513 = vmatprep.subr.mxu0 0.0
        %514 = vmatpush1.msra.mxu0 0.0
        %515 = vmatprep.subr.mxu0 0.0
        %516 = vmatpush1.msra.mxu0 0.0
        %517 = vmatprep.subr.mxu0 0.0
        %518 = vmatpush1.msra.mxu0 0.0
        %519 = vmatprep.subr.mxu0 0.0
        %520 = vmatpush1.msra.mxu0 0.0
        %521 = vmatprep.subr.mxu0 0.0
        %522 = vmatpush1.msra.mxu0 0.0
        %523 = vmatprep.subr.mxu0 0.0
        %524 = vmatpush1.msra.mxu0 0.0
        %525 = vmatprep.subr.mxu0 0.0
        %526 = vmatpush1.msra.mxu0 0.0
        %527 = vmatprep.subr.mxu0 0.0
        %528 = vmatpush1.msra.mxu0 0.0
        %529 = vmatprep.subr.mxu0 0.0
        %530 = vmatpush1.msra.mxu0 0.0
        %531 = vmatprep.subr.mxu0 0.0
        %532 = vmatpush1.msra.mxu0 0.0
        %533 = vmatprep.subr.mxu0 0.0
        %534 = vmatpush1.msra.mxu0 0.0
        %535 = vmatprep.subr.mxu0 0.0
        %536 = vmatpush1.msra.mxu0 0.0
        %537 = vmatprep.subr.mxu0 0.0
        %538 = vmatpush1.msra.mxu0 0.0
        %539 = vmatprep.subr.mxu0 0.0
        %540 = vmatpush1.msra.mxu0 0.0
        %541 = vmatprep.subr.mxu0 0.0
        %542 = vmatpush1.msra.mxu0 0.0
        %543 = vmatprep.subr.mxu0 0.0
        %544 = vmatpush1.msra.mxu0 0.0
        %545 = vmatprep.subr.mxu0 0.0
        %546 = vmatpush1.msra.mxu0 0.0
        %547 = vmatprep.subr.mxu0 0.0
        %548 = vmatpush1.msra.mxu0 0.0
        %549 = vmatprep.subr.mxu0 0.0
        %550 = vmatpush1.msra.mxu0 0.0
        %551 = vmatprep.subr.mxu0 0.0
        %552 = vmatpush1.msra.mxu0 0.0
        %553 = vmatprep.subr.mxu0 0.0
        %554 = vmatpush1.msra.mxu0 0.0
        %555 = vmatprep.subr.mxu0 0.0
        %556 = vmatpush1.msra.mxu0 0.0
        %557 = vmatprep.subr.mxu0 0.0
        %558 = vmatpush1.msra.mxu0 0.0
        %559 = vmatprep.subr.mxu0 0.0
        %560 = vmatpush1.msra.mxu0 0.0
        %561 = vmatprep.subr.mxu0 0.0
        %562 = vmatpush1.msra.mxu0 0.0
        %563 = vmatprep.subr.mxu0 0.0
        %564 = vmatpush1.msra.mxu0 0.0
        %565 = vmatprep.mubr.f32.mxu0 0.0
        %566 = vmatmul.mubr.f32.gmra.mrb[0].mxu0 %v499
        %v567 = vpop.f32.mrb[0].mxu0
        %v568 = vadd.f32 0.0, %v567
        %v569 = vpop.f32.mrb[0].mxu0
        %570 = vdwg.mxu0
        %v571 = vld [vmem:[%s5] sm:$0xff]
        %v572 = vld [vmem:[%s5 + $0x8] sm:$0xff]
        %v573 = vld [vmem:[%s5 + $0x10] sm:$0xff]
        %v574 = vld [vmem:[%s5 + $0x18] sm:$0xff]
        %v576 = vsel %vm420, %v415, 0
        %578 = vmatprep.subr.mxu0 0.0
        %579 = vmatpush1.msra.mxu0 %v571
        %580 = vmatprep.subr.mxu0 0.0
        %581 = vmatpush1.msra.mxu0 %v572
        %582 = vmatprep.subr.mxu0 0.0
        %583 = vmatpush1.msra.mxu0 %v573
        %584 = vmatprep.subr.mxu0 0.0
        %585 = vmatpush1.msra.mxu0 %v574
        %586 = vmatprep.subr.mxu0 0.0
        %587 = vmatpush1.msra.mxu0 0.0
        %588 = vmatprep.subr.mxu0 0.0
        %589 = vmatpush1.msra.mxu0 0.0
        %590 = vmatprep.subr.mxu0 0.0
        %591 = vmatpush1.msra.mxu0 0.0
        %592 = vmatprep.subr.mxu0 0.0
        %593 = vmatpush1.msra.mxu0 0.0
        %594 = vmatprep.subr.mxu0 0.0
        %595 = vmatpush1.msra.mxu0 0.0
        %596 = vmatprep.subr.mxu0 0.0
        %597 = vmatpush1.msra.mxu0 0.0
        %598 = vmatprep.subr.mxu0 0.0
        %599 = vmatpush1.msra.mxu0 0.0
        %600 = vmatprep.subr.mxu0 0.0
        %601 = vmatpush1.msra.mxu0 0.0
        %602 = vmatprep.subr.mxu0 0.0
        %603 = vmatpush1.msra.mxu0 0.0
        %604 = vmatprep.subr.mxu0 0.0
        %605 = vmatpush1.msra.mxu0 0.0
        %606 = vmatprep.subr.mxu0 0.0
        %607 = vmatpush1.msra.mxu0 0.0
        %608 = vmatprep.subr.mxu0 0.0
        %609 = vmatpush1.msra.mxu0 0.0
        %610 = vmatprep.subr.mxu0 0.0
        %611 = vmatpush1.msra.mxu0 0.0
        %612 = vmatprep.subr.mxu0 0.0
        %613 = vmatpush1.msra.mxu0 0.0
        %614 = vmatprep.subr.mxu0 0.0
        %615 = vmatpush1.msra.mxu0 0.0
        %616 = vmatprep.subr.mxu0 0.0
        %617 = vmatpush1.msra.mxu0 0.0
        %618 = vmatprep.subr.mxu0 0.0
        %619 = vmatpush1.msra.mxu0 0.0
        %620 = vmatprep.subr.mxu0 0.0
        %621 = vmatpush1.msra.mxu0 0.0
        %622 = vmatprep.subr.mxu0 0.0
        %623 = vmatpush1.msra.mxu0 0.0
        %624 = vmatprep.subr.mxu0 0.0
        %625 = vmatpush1.msra.mxu0 0.0
        %626 = vmatprep.subr.mxu0 0.0
        %627 = vmatpush1.msra.mxu0 0.0
        %628 = vmatprep.subr.mxu0 0.0
        %629 = vmatpush1.msra.mxu0 0.0
        %630 = vmatprep.subr.mxu0 0.0
        %631 = vmatpush1.msra.mxu0 0.0
        %632 = vmatprep.subr.mxu0 0.0
        %633 = vmatpush1.msra.mxu0 0.0
        %634 = vmatprep.subr.mxu0 0.0
        %635 = vmatpush1.msra.mxu0 0.0
        %636 = vmatprep.subr.mxu0 0.0
        %637 = vmatpush1.msra.mxu0 0.0
        %638 = vmatprep.subr.mxu0 0.0
        %639 = vmatpush1.msra.mxu0 0.0
        %640 = vmatprep.subr.mxu0 0.0
        %641 = vmatpush1.msra.mxu0 0.0
        %642 = vmatprep.mubr.f32.mxu0 0.0
        %643 = vmatmul.mubr.f32.gmra.mrb[0].mxu0 %v576
        %v644 = vpop.f32.mrb[0].mxu0
        %v645 = vadd.f32 0.0, %v644
        %v646 = vpop.f32.mrb[0].mxu0
        %647 = vdwg.mxu0
        %vm648 = vcmask 64512
        %v650 = vsel %vm648, %v491, 0
        %v653 = vsel %vm648, %v568, 0
        %655 = vmatprep.subr.mxu0 0.0
        %656 = vmatpush1.xpose.msra.mxu0 %v653
        %657 = vmatprep.subr.mxu0 0.0
        %658 = vmatpush1.xpose.msra.mxu0 0.0
        %659 = vmatprep.subr.mxu0 0.0
        %660 = vmatpush1.xpose.msra.mxu0 0.0
        %661 = vmatprep.subr.mxu0 0.0
        %662 = vmatpush1.xpose.msra.mxu0 0.0
        %663 = vmatprep.subr.mxu0 0.0
        %664 = vmatpush1.xpose.msra.mxu0 0.0
        %665 = vmatprep.subr.mxu0 0.0
        %666 = vmatpush1.xpose.msra.mxu0 0.0
        %667 = vmatprep.subr.mxu0 0.0
        %668 = vmatpush1.xpose.msra.mxu0 0.0
        %669 = vmatprep.subr.mxu0 0.0
        %670 = vmatpush1.xpose.msra.mxu0 0.0
        %671 = vmatprep.subr.mxu0 0.0
        %672 = vmatpush1.xpose.msra.mxu0 0.0
        %673 = vmatprep.subr.mxu0 0.0
        %674 = vmatpush1.xpose.msra.mxu0 0.0
        %675 = vmatprep.subr.mxu0 0.0
        %676 = vmatpush1.xpose.msra.mxu0 0.0
        %677 = vmatprep.subr.mxu0 0.0
        %678 = vmatpush1.xpose.msra.mxu0 0.0
        %679 = vmatprep.subr.mxu0 0.0
        %680 = vmatpush1.xpose.msra.mxu0 0.0
        %681 = vmatprep.subr.mxu0 0.0
        %682 = vmatpush1.xpose.msra.mxu0 0.0
        %683 = vmatprep.subr.mxu0 0.0
        %684 = vmatpush1.xpose.msra.mxu0 0.0
        %685 = vmatprep.subr.mxu0 0.0
        %686 = vmatpush1.xpose.msra.mxu0 0.0
        %687 = vmatprep.subr.mxu0 0.0
        %688 = vmatpush1.xpose.msra.mxu0 0.0
        %689 = vmatprep.subr.mxu0 0.0
        %690 = vmatpush1.xpose.msra.mxu0 0.0
        %691 = vmatprep.subr.mxu0 0.0
        %692 = vmatpush1.xpose.msra.mxu0 0.0
        %693 = vmatprep.subr.mxu0 0.0
        %694 = vmatpush1.xpose.msra.mxu0 0.0
        %695 = vmatprep.subr.mxu0 0.0
        %696 = vmatpush1.xpose.msra.mxu0 0.0
        %697 = vmatprep.subr.mxu0 0.0
        %698 = vmatpush1.xpose.msra.mxu0 0.0
        %699 = vmatprep.subr.mxu0 0.0
        %700 = vmatpush1.xpose.msra.mxu0 0.0
        %701 = vmatprep.subr.mxu0 0.0
        %702 = vmatpush1.xpose.msra.mxu0 0.0
        %703 = vmatprep.subr.mxu0 0.0
        %704 = vmatpush1.xpose.msra.mxu0 0.0
        %705 = vmatprep.subr.mxu0 0.0
        %706 = vmatpush1.xpose.msra.mxu0 0.0
        %707 = vmatprep.subr.mxu0 0.0
        %708 = vmatpush1.xpose.msra.mxu0 0.0
        %709 = vmatprep.subr.mxu0 0.0
        %710 = vmatpush1.xpose.msra.mxu0 0.0
        %711 = vmatprep.subr.mxu0 0.0
        %712 = vmatpush1.xpose.msra.mxu0 0.0
        %713 = vmatprep.subr.mxu0 0.0
        %714 = vmatpush1.xpose.msra.mxu0 0.0
        %715 = vmatprep.subr.mxu0 0.0
        %716 = vmatpush1.xpose.msra.mxu0 0.0
        %717 = vmatprep.subr.mxu0 0.0
        %718 = vmatpush1.xpose.msra.mxu0 0.0
        %719 = vmatprep.mubr.f32.mxu0 0.0
        %720 = vmatmul.mubr.f32.gmra.mrb[0].mxu0 %v650
        %v721 = vpop.f32.mrb[0].mxu0
        %v722 = vadd.f32 0.0, %v721
        %v723 = vpop.f32.mrb[0].mxu0
        %724 = vdwg.mxu0
        %v725 = vmul.f32 %v722, 0.35355338
        %v726 = vsel %vm648, %v725, -inf
        %727 = vmax.xlane.f32.xlu0 %v726
        %v728 = vpop.xlane.xlu0 %727
        %v729 = vsub.f32 %v725, %v728
        %v730 = vmul.f32 %v729, 1.442695
        %v731 = vpow.pop %v730
        %v732 = vsel %vm648, %v731, 0.0
        %733 = vadd.xlane.f32.xlu0 %v732
        %v734 = vpop.xlane.xlu0 %733
        %v735 = vrcp.pop %v734
        %v736 = vmul.f32 %v731, %v735
        %737 = vst.msk [vmem:[%s408] sm:$0xff] %vm648, %v736
        %v738 = vadd.f32 %v736, 0.0
        %739 = vrot.lane.b32.xlu0 %v491, 120
        %v740 = vpop.permute.xlu0 %739
        %741 = vrot.lane.b32.xlu0 %v568, 120
        %v742 = vpop.permute.xlu0 %741
        %v743 = vsel %vm648, %v740, 0
        %v745 = vsel %vm648, %v742, 0
        %747 = vmatprep.subr.mxu0 0.0
        %748 = vmatpush1.xpose.msra.mxu0 %v745
        %749 = vmatprep.subr.mxu0 0.0
        %750 = vmatpush1.xpose.msra.mxu0 0.0
        %751 = vmatprep.subr.mxu0 0.0
        %752 = vmatpush1.xpose.msra.mxu0 0.0
        %753 = vmatprep.subr.mxu0 0.0
        %754 = vmatpush1.xpose.msra.mxu0 0.0
        %755 = vmatprep.subr.mxu0 0.0
        %756 = vmatpush1.xpose.msra.mxu0 0.0
        %757 = vmatprep.subr.mxu0 0.0
        %758 = vmatpush1.xpose.msra.mxu0 0.0
        %759 = vmatprep.subr.mxu0 0.0
        %760 = vmatpush1.xpose.msra.mxu0 0.0
        %761 = vmatprep.subr.mxu0 0.0
        %762 = vmatpush1.xpose.msra.mxu0 0.0
        %763 = vmatprep.subr.mxu0 0.0
        %764 = vmatpush1.xpose.msra.mxu0 0.0
        %765 = vmatprep.subr.mxu0 0.0
        %766 = vmatpush1.xpose.msra.mxu0 0.0
        %767 = vmatprep.subr.mxu0 0.0
        %768 = vmatpush1.xpose.msra.mxu0 0.0
        %769 = vmatprep.subr.mxu0 0.0
        %770 = vmatpush1.xpose.msra.mxu0 0.0
        %771 = vmatprep.subr.mxu0 0.0
        %772 = vmatpush1.xpose.msra.mxu0 0.0
        %773 = vmatprep.subr.mxu0 0.0
        %774 = vmatpush1.xpose.msra.mxu0 0.0
        %775 = vmatprep.subr.mxu0 0.0
        %776 = vmatpush1.xpose.msra.mxu0 0.0
        %777 = vmatprep.subr.mxu0 0.0
        %778 = vmatpush1.xpose.msra.mxu0 0.0
        %779 = vmatprep.subr.mxu0 0.0
        %780 = vmatpush1.xpose.msra.mxu0 0.0
        %781 = vmatprep.subr.mxu0 0.0
        %782 = vmatpush1.xpose.msra.mxu0 0.0
        %783 = vmatprep.subr.mxu0 0.0
        %784 = vmatpush1.xpose.msra.mxu0 0.0
        %785 = vmatprep.subr.mxu0 0.0
        %786 = vmatpush1.xpose.msra.mxu0 0.0
        %787 = vmatprep.subr.mxu0 0.0
        %788 = vmatpush1.xpose.msra.mxu0 0.0
        %789 = vmatprep.subr.mxu0 0.0
        %790 = vmatpush1.xpose.msra.mxu0 0.0
        %791 = vmatprep.subr.mxu0 0.0
        %792 = vmatpush1.xpose.msra.mxu0 0.0
        %793 = vmatprep.subr.mxu0 0.0
        %794 = vmatpush1.xpose.msra.mxu0 0.0
        %795 = vmatprep.subr.mxu0 0.0
        %796 = vmatpush1.xpose.msra.mxu0 0.0
        %797 = vmatprep.subr.mxu0 0.0
        %798 = vmatpush1.xpose.msra.mxu0 0.0
        %799 = vmatprep.subr.mxu0 0.0
        %800 = vmatpush1.xpose.msra.mxu0 0.0
        %801 = vmatprep.subr.mxu0 0.0
        %802 = vmatpush1.xpose.msra.mxu0 0.0
        %803 = vmatprep.subr.mxu0 0.0
        %804 = vmatpush1.xpose.msra.mxu0 0.0
        %805 = vmatprep.subr.mxu0 0.0
        %806 = vmatpush1.xpose.msra.mxu0 0.0
        %807 = vmatprep.subr.mxu0 0.0
        %808 = vmatpush1.xpose.msra.mxu0 0.0
        %809 = vmatprep.subr.mxu0 0.0
        %810 = vmatpush1.xpose.msra.mxu0 0.0
        %811 = vmatprep.mubr.f32.mxu0 0.0
        %812 = vmatmul.mubr.f32.gmra.mrb[0].mxu0 %v743
        %v813 = vpop.f32.mrb[0].mxu0
        %v814 = vadd.f32 0.0, %v813
        %v815 = vpop.f32.mrb[0].mxu0
        %816 = vdwg.mxu0
        %v817 = vmul.f32 %v814, 0.35355338
        %v818 = vsel %vm648, %v817, -inf
        %819 = vmax.xlane.f32.xlu0 %v818
        %v820 = vpop.xlane.xlu0 %819
        %v821 = vsub.f32 %v817, %v820
        %v822 = vmul.f32 %v821, 1.442695
        %v823 = vpow.pop %v822
        %v824 = vsel %vm648, %v823, 0.0
        %825 = vadd.xlane.f32.xlu0 %v824
        %v826 = vpop.xlane.xlu0 %825
        %v827 = vrcp.pop %v826
        %v828 = vmul.f32 %v823, %v827
        %s829 = scalar_lea.vmem %s408, 8 [#allocation11]
        %830 = vst.msk [vmem:[%s829] sm:$0xff] %vm648, %v828
        %v831 = vadd.f32 %v738, %v828
        %832 = vrot.lane.b32.xlu0 %v491, 112
        %v833 = vpop.permute.xlu0 %832
        %834 = vrot.lane.b32.xlu0 %v568, 112
        %v835 = vpop.permute.xlu0 %834
        %v836 = vsel %vm648, %v833, 0
        %v838 = vsel %vm648, %v835, 0
        %840 = vmatprep.subr.mxu0 0.0
        %841 = vmatpush1.xpose.msra.mxu0 %v838
        %842 = vmatprep.subr.mxu0 0.0
        %843 = vmatpush1.xpose.msra.mxu0 0.0
        %844 = vmatprep.subr.mxu0 0.0
        %845 = vmatpush1.xpose.msra.mxu0 0.0
        %846 = vmatprep.subr.mxu0 0.0
        %847 = vmatpush1.xpose.msra.mxu0 0.0
        %848 = vmatprep.subr.mxu0 0.0
        %849 = vmatpush1.xpose.msra.mxu0 0.0
        %850 = vmatprep.subr.mxu0 0.0
        %851 = vmatpush1.xpose.msra.mxu0 0.0
        %852 = vmatprep.subr.mxu0 0.0
        %853 = vmatpush1.xpose.msra.mxu0 0.0
        %854 = vmatprep.subr.mxu0 0.0
        %855 = vmatpush1.xpose.msra.mxu0 0.0
        %856 = vmatprep.subr.mxu0 0.0
        %857 = vmatpush1.xpose.msra.mxu0 0.0
        %858 = vmatprep.subr.mxu0 0.0
        %859 = vmatpush1.xpose.msra.mxu0 0.0
        %860 = vmatprep.subr.mxu0 0.0
        %861 = vmatpush1.xpose.msra.mxu0 0.0
        %862 = vmatprep.subr.mxu0 0.0
        %863 = vmatpush1.xpose.msra.mxu0 0.0
        %864 = vmatprep.subr.mxu0 0.0
        %865 = vmatpush1.xpose.msra.mxu0 0.0
        %866 = vmatprep.subr.mxu0 0.0
        %867 = vmatpush1.xpose.msra.mxu0 0.0
        %868 = vmatprep.subr.mxu0 0.0
        %869 = vmatpush1.xpose.msra.mxu0 0.0
        %870 = vmatprep.subr.mxu0 0.0
        %871 = vmatpush1.xpose.msra.mxu0 0.0
        %872 = vmatprep.subr.mxu0 0.0
        %873 = vmatpush1.xpose.msra.mxu0 0.0
        %874 = vmatprep.subr.mxu0 0.0
        %875 = vmatpush1.xpose.msra.mxu0 0.0
        %876 = vmatprep.subr.mxu0 0.0
        %877 = vmatpush1.xpose.msra.mxu0 0.0
        %878 = vmatprep.subr.mxu0 0.0
        %879 = vmatpush1.xpose.msra.mxu0 0.0
        %880 = vmatprep.subr.mxu0 0.0
        %881 = vmatpush1.xpose.msra.mxu0 0.0
        %882 = vmatprep.subr.mxu0 0.0
        %883 = vmatpush1.xpose.msra.mxu0 0.0
        %884 = vmatprep.subr.mxu0 0.0
        %885 = vmatpush1.xpose.msra.mxu0 0.0
        %886 = vmatprep.subr.mxu0 0.0
        %887 = vmatpush1.xpose.msra.mxu0 0.0
        %888 = vmatprep.subr.mxu0 0.0
        %889 = vmatpush1.xpose.msra.mxu0 0.0
        %890 = vmatprep.subr.mxu0 0.0
        %891 = vmatpush1.xpose.msra.mxu0 0.0
        %892 = vmatprep.subr.mxu0 0.0
        %893 = vmatpush1.xpose.msra.mxu0 0.0
        %894 = vmatprep.subr.mxu0 0.0
        %895 = vmatpush1.xpose.msra.mxu0 0.0
        %896 = vmatprep.subr.mxu0 0.0
        %897 = vmatpush1.xpose.msra.mxu0 0.0
        %898 = vmatprep.subr.mxu0 0.0
        %899 = vmatpush1.xpose.msra.mxu0 0.0
        %900 = vmatprep.subr.mxu0 0.0
        %901 = vmatpush1.xpose.msra.mxu0 0.0
        %902 = vmatprep.subr.mxu0 0.0
        %903 = vmatpush1.xpose.msra.mxu0 0.0
        %904 = vmatprep.mubr.f32.mxu0 0.0
        %905 = vmatmul.mubr.f32.gmra.mrb[0].mxu0 %v836
        %v906 = vpop.f32.mrb[0].mxu0
        %v907 = vadd.f32 0.0, %v906
        %v908 = vpop.f32.mrb[0].mxu0
        %909 = vdwg.mxu0
        %v910 = vmul.f32 %v907, 0.35355338
        %v911 = vsel %vm648, %v910, -inf
        %912 = vmax.xlane.f32.xlu0 %v911
        %v913 = vpop.xlane.xlu0 %912
        %v914 = vsub.f32 %v910, %v913
        %v915 = vmul.f32 %v914, 1.442695
        %v916 = vpow.pop %v915
        %v917 = vsel %vm648, %v916, 0.0
        %918 = vadd.xlane.f32.xlu0 %v917
        %v919 = vpop.xlane.xlu0 %918
        %v920 = vrcp.pop %v919
        %v921 = vmul.f32 %v916, %v920
        %s922 = scalar_lea.vmem %s408, 16 [#allocation11]
        %923 = vst.msk [vmem:[%s922] sm:$0xff] %vm648, %v921
        %v924 = vadd.f32 %v831, %v921
        %925 = vrot.lane.b32.xlu0 %v491, 104
        %v926 = vpop.permute.xlu0 %925
        %927 = vrot.lane.b32.xlu0 %v568, 104
        %v928 = vpop.permute.xlu0 %927
        %v929 = vsel %vm648, %v926, 0
        %v931 = vsel %vm648, %v928, 0
        %933 = vmatprep.subr.mxu0 0.0
        %934 = vmatpush1.xpose.msra.mxu0 %v931
        %935 = vmatprep.subr.mxu0 0.0
        %936 = vmatpush1.xpose.msra.mxu0 0.0
        %937 = vmatprep.subr.mxu0 0.0
        %938 = vmatpush1.xpose.msra.mxu0 0.0
        %939 = vmatprep.subr.mxu0 0.0
        %940 = vmatpush1.xpose.msra.mxu0 0.0
        %941 = vmatprep.subr.mxu0 0.0
        %942 = vmatpush1.xpose.msra.mxu0 0.0
        %943 = vmatprep.subr.mxu0 0.0
        %944 = vmatpush1.xpose.msra.mxu0 0.0
        %945 = vmatprep.subr.mxu0 0.0
        %946 = vmatpush1.xpose.msra.mxu0 0.0
        %947 = vmatprep.subr.mxu0 0.0
        %948 = vmatpush1.xpose.msra.mxu0 0.0
        %949 = vmatprep.subr.mxu0 0.0
        %950 = vmatpush1.xpose.msra.mxu0 0.0
        %951 = vmatprep.subr.mxu0 0.0
        %952 = vmatpush1.xpose.msra.mxu0 0.0
        %953 = vmatprep.subr.mxu0 0.0
        %954 = vmatpush1.xpose.msra.mxu0 0.0
        %955 = vmatprep.subr.mxu0 0.0
        %956 = vmatpush1.xpose.msra.mxu0 0.0
        %957 = vmatprep.subr.mxu0 0.0
        %958 = vmatpush1.xpose.msra.mxu0 0.0
        %959 = vmatprep.subr.mxu0 0.0
        %960 = vmatpush1.xpose.msra.mxu0 0.0
        %961 = vmatprep.subr.mxu0 0.0
        %962 = vmatpush1.xpose.msra.mxu0 0.0
        %963 = vmatprep.subr.mxu0 0.0
        %964 = vmatpush1.xpose.msra.mxu0 0.0
        %965 = vmatprep.subr.mxu0 0.0
        %966 = vmatpush1.xpose.msra.mxu0 0.0
        %967 = vmatprep.subr.mxu0 0.0
        %968 = vmatpush1.xpose.msra.mxu0 0.0
        %969 = vmatprep.subr.mxu0 0.0
        %970 = vmatpush1.xpose.msra.mxu0 0.0
        %971 = vmatprep.subr.mxu0 0.0
        %972 = vmatpush1.xpose.msra.mxu0 0.0
        %973 = vmatprep.subr.mxu0 0.0
        %974 = vmatpush1.xpose.msra.mxu0 0.0
        %975 = vmatprep.subr.mxu0 0.0
        %976 = vmatpush1.xpose.msra.mxu0 0.0
        %977 = vmatprep.subr.mxu0 0.0
        %978 = vmatpush1.xpose.msra.mxu0 0.0
        %979 = vmatprep.subr.mxu0 0.0
        %980 = vmatpush1.xpose.msra.mxu0 0.0
        %981 = vmatprep.subr.mxu0 0.0
        %982 = vmatpush1.xpose.msra.mxu0 0.0
        %983 = vmatprep.subr.mxu0 0.0
        %984 = vmatpush1.xpose.msra.mxu0 0.0
        %985 = vmatprep.subr.mxu0 0.0
        %986 = vmatpush1.xpose.msra.mxu0 0.0
        %987 = vmatprep.subr.mxu0 0.0
        %988 = vmatpush1.xpose.msra.mxu0 0.0
        %989 = vmatprep.subr.mxu0 0.0
        %990 = vmatpush1.xpose.msra.mxu0 0.0
        %991 = vmatprep.subr.mxu0 0.0
        %992 = vmatpush1.xpose.msra.mxu0 0.0
        %993 = vmatprep.subr.mxu0 0.0
        %994 = vmatpush1.xpose.msra.mxu0 0.0
        %995 = vmatprep.subr.mxu0 0.0
        %996 = vmatpush1.xpose.msra.mxu0 0.0
        %997 = vmatprep.mubr.f32.mxu0 0.0
        %998 = vmatmul.mubr.f32.gmra.mrb[0].mxu0 %v929
        %v999 = vpop.f32.mrb[0].mxu0
        %v1000 = vadd.f32 0.0, %v999
        %v1001 = vpop.f32.mrb[0].mxu0
        %1002 = vdwg.mxu0
        %v1003 = vmul.f32 %v1000, 0.35355338
        %v1004 = vsel %vm648, %v1003, -inf
        %1005 = vmax.xlane.f32.xlu0 %v1004
        %v1006 = vpop.xlane.xlu0 %1005
        %v1007 = vsub.f32 %v1003, %v1006
        %v1008 = vmul.f32 %v1007, 1.442695
        %v1009 = vpow.pop %v1008
        %v1010 = vsel %vm648, %v1009, 0.0
        %1011 = vadd.xlane.f32.xlu0 %v1010
        %v1012 = vpop.xlane.xlu0 %1011
        %v1013 = vrcp.pop %v1012
        %v1014 = vmul.f32 %v1009, %v1013
        %s1015 = scalar_lea.vmem %s408, 24 [#allocation11]
        %1016 = vst.msk [vmem:[%s1015] sm:$0xff] %vm648, %v1014
        %v1017 = vadd.f32 %v924, %v1014
        %v1018 = vmul.f32 %v1017, 0.25
        %v1020 = vsel %vm648, %v1018, 0
        %1022 = vmatprep.subr.mxu0 0.0
        %1023 = vmatpush1.msra.mxu0 %v645
        %1024 = vmatprep.subr.mxu0 0.0
        %1025 = vmatpush1.msra.mxu0 0.0
        %1026 = vmatprep.subr.mxu0 0.0
        %1027 = vmatpush1.msra.mxu0 0.0
        %1028 = vmatprep.subr.mxu0 0.0
        %1029 = vmatpush1.msra.mxu0 0.0
        %1030 = vmatprep.subr.mxu0 0.0
        %1031 = vmatpush1.msra.mxu0 0.0
        %1032 = vmatprep.subr.mxu0 0.0
        %1033 = vmatpush1.msra.mxu0 0.0
        %1034 = vmatprep.subr.mxu0 0.0
        %1035 = vmatpush1.msra.mxu0 0.0
        %1036 = vmatprep.subr.mxu0 0.0
        %1037 = vmatpush1.msra.mxu0 0.0
        %1038 = vmatprep.subr.mxu0 0.0
        %1039 = vmatpush1.msra.mxu0 0.0
        %1040 = vmatprep.subr.mxu0 0.0
        %1041 = vmatpush1.msra.mxu0 0.0
        %1042 = vmatprep.subr.mxu0 0.0
        %1043 = vmatpush1.msra.mxu0 0.0
        %1044 = vmatprep.subr.mxu0 0.0
        %1045 = vmatpush1.msra.mxu0 0.0
        %1046 = vmatprep.subr.mxu0 0.0
        %1047 = vmatpush1.msra.mxu0 0.0
        %1048 = vmatprep.subr.mxu0 0.0
        %1049 = vmatpush1.msra.mxu0 0.0
        %1050 = vmatprep.subr.mxu0 0.0
        %1051 = vmatpush1.msra.mxu0 0.0
        %1052 = vmatprep.subr.mxu0 0.0
        %1053 = vmatpush1.msra.mxu0 0.0
        %1054 = vmatprep.subr.mxu0 0.0
        %1055 = vmatpush1.msra.mxu0 0.0
        %1056 = vmatprep.subr.mxu0 0.0
        %1057 = vmatpush1.msra.mxu0 0.0
        %1058 = vmatprep.subr.mxu0 0.0
        %1059 = vmatpush1.msra.mxu0 0.0
        %1060 = vmatprep.subr.mxu0 0.0
        %1061 = vmatpush1.msra.mxu0 0.0
        %1062 = vmatprep.subr.mxu0 0.0
        %1063 = vmatpush1.msra.mxu0 0.0
        %1064 = vmatprep.subr.mxu0 0.0
        %1065 = vmatpush1.msra.mxu0 0.0
        %1066 = vmatprep.subr.mxu0 0.0
        %1067 = vmatpush1.msra.mxu0 0.0
        %1068 = vmatprep.subr.mxu0 0.0
        %1069 = vmatpush1.msra.mxu0 0.0
        %1070 = vmatprep.subr.mxu0 0.0
        %1071 = vmatpush1.msra.mxu0 0.0
        %1072 = vmatprep.subr.mxu0 0.0
        %1073 = vmatpush1.msra.mxu0 0.0
        %1074 = vmatprep.subr.mxu0 0.0
        %1075 = vmatpush1.msra.mxu0 0.0
        %1076 = vmatprep.subr.mxu0 0.0
        %1077 = vmatpush1.msra.mxu0 0.0
        %1078 = vmatprep.subr.mxu0 0.0
        %1079 = vmatpush1.msra.mxu0 0.0
        %1080 = vmatprep.subr.mxu0 0.0
        %1081 = vmatpush1.msra.mxu0 0.0
        %1082 = vmatprep.subr.mxu0 0.0
        %1083 = vmatpush1.msra.mxu0 0.0
        %1084 = vmatprep.subr.mxu0 0.0
        %1085 = vmatpush1.msra.mxu0 0.0
        %1086 = vmatprep.mubr.f32.mxu0 0.0
        %1087 = vmatmul.mubr.f32.gmra.mrb[0].mxu0 %v1020
        %v1088 = vpop.f32.mrb[0].mxu0
        %v1089 = vadd.f32 0.0, %v1088
        %v1090 = vpop.f32.mrb[0].mxu0
        %1091 = vdwg.mxu0
        %v1092 = vld [vmem:[#allocation8] sm:$0xff]
        %v1094 = vsel %vm648, %v1089, 0
        %1096 = vmatprep.subr.mxu0 0.0
        %1097 = vmatpush1.msra.mxu0 %v1092
        %1098 = vmatprep.subr.mxu0 0.0
        %1099 = vmatpush1.msra.mxu0 0.0
        %1100 = vmatprep.subr.mxu0 0.0
        %1101 = vmatpush1.msra.mxu0 0.0
        %1102 = vmatprep.subr.mxu0 0.0
        %1103 = vmatpush1.msra.mxu0 0.0
        %1104 = vmatprep.subr.mxu0 0.0
        %1105 = vmatpush1.msra.mxu0 0.0
        %1106 = vmatprep.subr.mxu0 0.0
        %1107 = vmatpush1.msra.mxu0 0.0
        %1108 = vmatprep.subr.mxu0 0.0
        %1109 = vmatpush1.msra.mxu0 0.0
        %1110 = vmatprep.subr.mxu0 0.0
        %1111 = vmatpush1.msra.mxu0 0.0
        %1112 = vmatprep.subr.mxu0 0.0
        %1113 = vmatpush1.msra.mxu0 0.0
        %1114 = vmatprep.subr.mxu0 0.0
        %1115 = vmatpush1.msra.mxu0 0.0
        %1116 = vmatprep.subr.mxu0 0.0
        %1117 = vmatpush1.msra.mxu0 0.0
        %1118 = vmatprep.subr.mxu0 0.0
        %1119 = vmatpush1.msra.mxu0 0.0
        %1120 = vmatprep.subr.mxu0 0.0
        %1121 = vmatpush1.msra.mxu0 0.0
        %1122 = vmatprep.subr.mxu0 0.0
        %1123 = vmatpush1.msra.mxu0 0.0
        %1124 = vmatprep.subr.mxu0 0.0
        %1125 = vmatpush1.msra.mxu0 0.0
        %1126 = vmatprep.subr.mxu0 0.0
        %1127 = vmatpush1.msra.mxu0 0.0
        %1128 = vmatprep.subr.mxu0 0.0
        %1129 = vmatpush1.msra.mxu0 0.0
        %1130 = vmatprep.subr.mxu0 0.0
        %1131 = vmatpush1.msra.mxu0 0.0
        %1132 = vmatprep.subr.mxu0 0.0
        %1133 = vmatpush1.msra.mxu0 0.0
        %1134 = vmatprep.subr.mxu0 0.0
        %1135 = vmatpush1.msra.mxu0 0.0
        %1136 = vmatprep.subr.mxu0 0.0
        %1137 = vmatpush1.msra.mxu0 0.0
        %1138 = vmatprep.subr.mxu0 0.0
        %1139 = vmatpush1.msra.mxu0 0.0
        %1140 = vmatprep.subr.mxu0 0.0
        %1141 = vmatpush1.msra.mxu0 0.0
        %1142 = vmatprep.subr.mxu0 0.0
        %1143 = vmatpush1.msra.mxu0 0.0
        %1144 = vmatprep.subr.mxu0 0.0
        %1145 = vmatpush1.msra.mxu0 0.0
        %1146 = vmatprep.subr.mxu0 0.0
        %1147 = vmatpush1.msra.mxu0 0.0
        %1148 = vmatprep.subr.mxu0 0.0
        %1149 = vmatpush1.msra.mxu0 0.0
        %1150 = vmatprep.subr.mxu0 0.0
        %1151 = vmatpush1.msra.mxu0 0.0
        %1152 = vmatprep.subr.mxu0 0.0
        %1153 = vmatpush1.msra.mxu0 0.0
        %1154 = vmatprep.subr.mxu0 0.0
        %1155 = vmatpush1.msra.mxu0 0.0
        %1156 = vmatprep.subr.mxu0 0.0
        %1157 = vmatpush1.msra.mxu0 0.0
        %1158 = vmatprep.subr.mxu0 0.0
        %1159 = vmatpush1.msra.mxu0 0.0
        %1160 = vmatprep.mubr.f32.mxu0 0.0
        %1161 = vmatmul.mubr.f32.gmra.mrb[0].mxu0 %v1094
        %v1162 = vpop.f32.mrb[0].mxu0
        %v1163 = vadd.f32 0.0, %v1162
        %v1164 = vpop.f32.mrb[0].mxu0
        %1165 = vdwg.mxu0
        %1166 = vst.msk [vmem:[%s401] sm:$0xff] %vm420, %v1163
        %s1167 = sand.u32 %s203, 1
        %s1168 = scalar_lea.sflag [#allocation4], %s1167
        %s1169 = sand.u32 %s203, 1
        %s1170 = smul.addr %s1169, 8
        %s1171 = scalar_lea.vmem [#allocation10], %s1170
        %s1172 = sand.u32 %s229, 1
        %s1173 = scalar_lea.sflag [#allocation12], %s1172
        %s1174 = sand.u32 %s229, 1
        %s1175 = smul.addr %s1174, 32
        %s1176 = scalar_lea.vmem [#allocation11], %s1175
        // Predicated region
        $region65: #{tpu_custom_call.1} parent=47 // pred_check
          %p1177 = pneg %p213
        $region66: #{tpu_custom_call.1} parent=47 // pred_check_branch
          %1179 = sbr.rel (%p1177) target = $region68
        $region67: #{tpu_custom_call.1} parent=47 // pred_region
          %s1181 = ssub.s32 128, 128
          %1182 = vsyncadd %s1168, %s1181
          %s1183 = smul.addr %s33, 128
          %s1184 = scalar_lea.hbm %s7, %s1183
          %s1186 = sshll.u32 %s1171, 4
          %s1187 = int_to_ptr.vmem [resolvable:$true] %s1186
          %1189 = dma.vmem_to_hbm [thread:$0]  %s1187, 128, %s1184, %s1168
        $region68: #{tpu_custom_call.1} parent=47 // pred_fallthru
          _
        // Predicated region
        $region69: #{tpu_custom_call.1} parent=47 // pred_check
          %p1190 = pneg %p239
        $region70: #{tpu_custom_call.1} parent=47 // pred_check_branch
          %1192 = sbr.rel (%p1190) target = $region72
        $region71: #{tpu_custom_call.1} parent=47 // pred_region
          %s1194 = ssub.s32 512, 512
          %1195 = vsyncadd %s1173, %s1194
          %s1196 = smul.addr %s33, 4
          %s1197 = smul.addr %s1196, 128
          %s1198 = scalar_lea.hbm %s8, %s1197
          %s1199 = sshll.u32 %s1176, 4
          %s1200 = int_to_ptr.vmem [resolvable:$true] %s1199
          %1205 = dma.vmem_to_hbm [thread:$0]  %s1200, 512, %s1198, %s1173, 128, 128, 8
        $region72: #{tpu_custom_call.1} parent=47 // pred_fallthru
          _
      $region48: #{tpu_custom_call.1} parent=5 // pred_fallthru
        _
      %p1206 = scmp.le.s32.totalorder 2, %s28
      // Predicated region
      $region73: #{tpu_custom_call.1} parent=5 // pred_check
        %p1207 = pneg %p1206
      $region74: #{tpu_custom_call.1} parent=5 // pred_check_branch
        %1209 = sbr.rel (%p1207) target = $region76
      $region75: #{tpu_custom_call.1} parent=5 // pred_region
        %s1210 = ssub.s32 %s28, 2
        // Predicated region
        $region77: #{tpu_custom_call.1} parent=75 // pred_check
          %p1211 = pneg %p219
        $region78: #{tpu_custom_call.1} parent=75 // pred_check_branch
          %1213 = sbr.rel (%p1211) target = $region80
        $region79: #{tpu_custom_call.1} parent=75 // pred_region
          %s1214 = sand.u32 %s204, 1
          %s1215 = scalar_lea.sflag [#allocation4], %s1214
          %s1216 = sand.u32 %s204, 1
          %s1217 = smul.addr %s1216, 8
          %s1218 = scalar_lea.vmem [#allocation10], %s1217
          %1219 = dma.done %s1215, 128
        $region80: #{tpu_custom_call.1} parent=75 // pred_fallthru
          _
        // Predicated region
        $region81: #{tpu_custom_call.1} parent=75 // pred_check
          %p1220 = pneg %p245
        $region82: #{tpu_custom_call.1} parent=75 // pred_check_branch
          %1222 = sbr.rel (%p1220) target = $region84
        $region83: #{tpu_custom_call.1} parent=75 // pred_region
          %s1223 = sand.u32 %s230, 1
          %s1224 = scalar_lea.sflag [#allocation12], %s1223
          %s1225 = sand.u32 %s230, 1
          %s1226 = smul.addr %s1225, 32
          %s1227 = scalar_lea.vmem [#allocation11], %s1226
          %1228 = dma.done %s1224, 512
        $region84: #{tpu_custom_call.1} parent=75 // pred_fallthru
          _
      $region76: #{tpu_custom_call.1} parent=5 // pred_fallthru
        _
    $region6: #{tpu_custom_call.1} parent=1 // loop_footer
      %s32 = sadd.s32 1, %s28
    $region7: #{tpu_custom_call.1} parent=1 // loop_footer_branch
      %27 = sbr.rel target = $region3
    $region8: #{tpu_custom_call.1} parent=1 // loop_exit
      _
    %1229 = vsyncpa [#allocation3], 1
    %s1230 = scalar_lea.sflag [#allocation3], 1
    %1231 = vsyncpa %s1230, 1
    %1232 = vsyncpa [#allocation6], 1
    %s1233 = scalar_lea.sflag [#allocation6], 1
    %1234 = vsyncpa %s1233, 1
    %1235 = vsyncpa [#allocation9], 1
    %1236 = vsyncpa [#allocation4], 1
    %s1237 = scalar_lea.sflag [#allocation4], 1
    %1238 = vsyncpa %s1237, 1
    %1239 = vsyncpa [#allocation12], 1
    %s1240 = scalar_lea.sflag [#allocation12], 1
    %1241 = vsyncpa %s1240, 1

</llo_original>
